<compile_context>
chip_gen: v5e
topology: v5e:2x2
jax: 0.10.0
libtpu: 0.0.40
codegen_flags: <defaults>
</compile_context>

<pallas_src>
import functools

import jax
import jax.numpy as jnp
from jax import lax
from jax.experimental import pallas as pl
from jax.experimental.pallas import tpu as pltpu

_LANE = 128
_NCORES = 2   # megacore split for pass 1; harmless (sequential) on 1-TC chips


def _round_up(x, m):
    return (x + m - 1) // m * m


# ---------- Pass 1: conv matmul -> per-channel sum / sum-of-squares (stats only) ----------
def _stats_kernel(patches_ref, w_ref, stats_ref, acc_ref):
    m = pl.program_id(1)
    k = pl.program_id(2)
    nk = pl.num_programs(2)

    @pl.when((m == 0) & (k == 0))
    def _():
        stats_ref[...] = jnp.zeros_like(stats_ref)

    @pl.when(k == 0)
    def _():
        acc_ref[...] = jnp.zeros_like(acc_ref)

    # (tile_m, tile_k) bf16 @ (tile_k, C_pad) bf16 -> f32 partial conv tile on the MXU.
    acc_ref[...] += jnp.dot(patches_ref[...], w_ref[...],
                            preferred_element_type=jnp.float32)

    @pl.when(k == nk - 1)
    def _():
        conv = acc_ref[...]
        # Column reductions on the (idle) MXU instead of VALU/XLU sublane reductions:
        # ones(8, tile_m) @ conv replicates the per-channel column sum across 8 sublanes.
        ones = jnp.ones((8, conv.shape[0]), dtype=jnp.float32)
        stats_ref[0:8, :] = stats_ref[0:8, :] + jnp.dot(
            ones, conv, preferred_element_type=jnp.float32)
        stats_ref[8:16, :] = stats_ref[8:16, :] + jnp.dot(
            ones, conv * conv, preferred_element_type=jnp.float32)


# ---------- Pass 2: conv matmul (recomputed) + BN scale/shift + ReLU ----------
def _conv_bn_relu_kernel(patches_ref, w_ref, scale_ref, shift_ref, out_ref, acc_ref):
    k = pl.program_id(1)

    @pl.when(k == 0)
    def _():
        acc_ref[...] = jnp.zeros_like(acc_ref)

    acc_ref[...] += jnp.dot(patches_ref[...], w_ref[...],
                            preferred_element_type=jnp.float32)

    @pl.when(k == pl.num_programs(1) - 1)
    def _():
        y = acc_ref[...] * scale_ref[...] + shift_ref[...]
        out_ref[...] = jnp.maximum(y, 0.0)


def _pick_tiles(M, K_pad, C_pad):
    """tile_k: largest 128-multiple divisor of K_pad (capped); tile_m: fits VMEM budget."""
    q = K_pad // _LANE
    tile_kq = 1
    for d in range(1, min(q, 16) + 1):     # cap tile_k at 2048
        if q % d == 0:
            tile_kq = d
    tile_k = tile_kq * _LANE

    budget = 24 << 20                       # per-step working-set target (safe on all gens)
    fixed = 2 * tile_k * C_pad * 2 + 2 * 16 * C_pad * 4
    per_row = 2 * tile_k * 2 + 2 * C_pad * 4 + C_pad * 4
    tile_m = (budget - fixed) // per_row
    tile_m = max(256, min(2048, (tile_m // 256) * 256))
    # Don't over-pad tiny problems: at most one tile per core worth of rows.
    tile_m = min(tile_m, max(256, _round_up(pl.cdiv(M, _NCORES), 256)))
    return tile_m, tile_k


def base_conv_forward(x_nchw, weight_oihw, gamma, beta, *, ksize, stride, eps=1e-5):
    """BaseConv.forward: ReLU(BatchNorm2d(Conv2d(x))), groups=1, bias=False."""
    N, Cin, H, W = x_nchw.shape
    Cout = weight_oihw.shape[0]
    pad = (ksize - 1) // 2

    # --- glue: NCHW -> NHWC (bf16), pad, im2col ---
    x_nhwc = jnp.transpose(x_nchw, (0, 2, 3, 1)).astype(jnp.bfloat16)
    x_pad = jnp.pad(x_nhwc, ((0, 0), (pad, pad), (pad, pad), (0, 0)))
    Hp, Wp = H + 2 * pad, W + 2 * pad
    Ho = (Hp - ksize) // stride + 1
    Wo = (Wp - ksize) // stride + 1

    cols = []
    for kh in range(ksize):
        for kw in range(ksize):
            cols.append(
                x_pad[:, kh:kh + Ho * stride:stride, kw:kw + Wo * stride:stride, :])
    # (N, Ho, Wo, k*k, Cin) -> (M, K), feature order (kh, kw, c_in).
    patches = jnp.stack(cols, axis=3).reshape(N * Ho * Wo, ksize * ksize * Cin)
    # OIHW -> (kh, kw, Cin, Cout) -> (K, Cout) bf16, matching the patch feature order.
    w_mat = jnp.transpose(weight_oihw, (2, 3, 1, 0)).reshape(
        ksize * ksize * Cin, Cout).astype(jnp.bfloat16)

    M, K = patches.shape
    K_pad = _round_up(K, _LANE)          # dense lanes / full MXU contraction
    C_pad = _round_up(Cout, _LANE)       # lane-dense (unmasked vst) output
    tile_m, tile_k = _pick_tiles(M, K_pad, C_pad)

    num_m = _round_up(pl.cdiv(M, tile_m), _NCORES)
    num_m_half = num_m // _NCORES
    M_pad = num_m * tile_m
    num_k = K_pad // tile_k

    # Zero-padded rows give zero conv rows (no effect on BN sums: we divide by real M);
    # zero-padded channels are sliced off at the end.
    patches_p = jnp.pad(patches, ((0, M_pad - M), (0, K_pad - K)))
    w_p = jnp.pad(w_mat, ((0, K_pad - K), (0, C_pad - Cout)))
    gamma_p = jnp.pad(gamma.astype(jnp.float32), (0, C_pad - Cout))
    beta_p = jnp.pad(beta.astype(jnp.float32), (0, C_pad - Cout))

    # Generation-aware VMEM budget (v5e/v6e: 128 MiB physical, v7x: 64 MiB per TC).
    need = (2 * tile_m * tile_k * 2      # double-buffered patch tiles (bf16)
            + 2 * tile_k * C_pad * 2     # double-buffered weight tiles (bf16)
            + 3 * tile_m * C_pad * 4     # output double-buffer + f32 accumulator
            + 4 * 16 * C_pad * 4)        # stats / scale / shift blocks
    try:
        vmem_phys = int(pltpu.get_tpu_info().vmem_capacity_bytes)
    except Exception:
        vmem_phys = 64 << 20             # conservative fallback (v7x per-core)
    vmem_limit = int(min(max(2 * need, 16 << 20),
                         max(vmem_phys - (16 << 20), 32 << 20)))

    # ---- pass 1: per-channel sum / sum-of-squares of the conv output ----
    stats_raw = pl.pallas_call(
        _stats_kernel,
        out_shape=jax.ShapeDtypeStruct((_NCORES * 16, C_pad), jnp.float32),
        grid_spec=pltpu.PrefetchScalarGridSpec(
            num_scalar_prefetch=0,
            grid=(_NCORES, num_m_half, num_k),
            in_specs=[
                pl.BlockSpec((tile_m, tile_k),
                             lambda c, m, k: (c * num_m_half + m, k)),
                pl.BlockSpec((tile_k, C_pad), lambda c, m, k: (k, 0)),
            ],
            out_specs=pl.BlockSpec((16, C_pad), lambda c, m, k: (c, 0)),
            scratch_shapes=[pltpu.VMEM((tile_m, C_pad), jnp.float32)],
        ),
        compiler_params=pltpu.CompilerParams(
            dimension_semantics=("parallel", "arbitrary", "arbitrary"),
            vmem_limit_bytes=vmem_limit),
    )(patches_p, w_p)

    # ---- hoisted per-channel scale/shift (training-mode batch statistics) ----
    stats = stats_raw.reshape(_NCORES, 16, C_pad).sum(axis=0)
    m_total = jnp.float32(M)             # padded rows contribute nothing
    mean = stats[0] / m_total
    # E[x^2]-E[x]^2 can go slightly negative from f32 cancellation; clamp before rsqrt.
    var = jnp.maximum(stats[8] / m_total - mean * mean, 0.0)
    inv_std = lax.rsqrt(var + eps)
    scale = (gamma_p * inv_std).reshape(1, C_pad)
    shift = (beta_p - mean * gamma_p * inv_std).reshape(1, C_pad)

    # ---- pass 2: recompute conv (MXU has slack) fused with scale/shift + ReLU ----
    out_flat = pl.pallas_call(
        _conv_bn_relu_kernel,
        out_shape=jax.ShapeDtypeStruct((M_pad, C_pad), jnp.float32),
        grid_spec=pltpu.PrefetchScalarGridSpec(
            num_scalar_prefetch=0,
            grid=(num_m, num_k),
            in_specs=[
                pl.BlockSpec((tile_m, tile_k), lambda m, k: (m, k)),
                pl.BlockSpec((tile_k, C_pad), lambda m, k: (k, 0)),
                pl.BlockSpec((1, C_pad), lambda m, k: (0, 0)),
                pl.BlockSpec((1, C_pad), lambda m, k: (0, 0)),
            ],
            out_specs=pl.BlockSpec((tile_m, C_pad), lambda m, k: (m, 0)),
            scratch_shapes=[pltpu.VMEM((tile_m, C_pad), jnp.float32)],
        ),
        compiler_params=pltpu.CompilerParams(
            dimension_semantics=("parallel", "arbitrary"),   # shards M tiles across TCs
            vmem_limit_bytes=vmem_limit),
    )(patches_p, w_p, scale, shift)

    # --- glue: de-pad, NHWC -> NCHW (module contract) ---
    out_nhwc = out_flat[:M, :Cout].reshape(N, Ho, Wo, Cout)
    return jnp.transpose(out_nhwc, (0, 3, 1, 2))


def _reference(x_nchw, weight_oihw, gamma, beta, *, ksize, stride, eps=1e-5,
               conv_operand_dtype=jnp.float32):
    """Pure-JAX reference.  conv_operand_dtype=bfloat16 matches MXU operand rounding."""
    pad = (ksize - 1) // 2
    xc = x_nchw.astype(conv_operand_dtype).astype(jnp.float32)
    wc = weight_oihw.astype(conv_operand_dtype).astype(jnp.float32)
    conv = lax.conv_general_dilated(
        xc, wc, window_strides=(stride, stride), padding=[(pad, pad), (pad, pad)],
        dimension_numbers=("NCHW", "OIHW", "NCHW"))
    mean = jnp.mean(conv, axis=(0, 2, 3), keepdims=True)
    var = jnp.mean((conv - mean) ** 2, axis=(0, 2, 3), keepdims=True)  # biased (training)
    y = (conv - mean) * lax.rsqrt(var + eps)
    y = y * gamma.reshape(1, -1, 1, 1) + beta.reshape(1, -1, 1, 1)
    return jnp.maximum(y, 0.0)


if __name__ == "__main__":
    # BaseConv(in_channels=4, out_channels=8, ksize=3, stride=1, groups=1, bias=False)
    # with input x: (2, 4, 16, 16) NCHW.
    N, Cin, H, W = 2, 4, 16, 16
    Cout, ksize, stride = 8, 3, 1

    key = jax.random.PRNGKey(0)
    kx, kw, kg, kb = jax.random.split(key, 4)
    x = jax.random.normal(kx, (N, Cin, H, W), dtype=jnp.float32)
    weight = jax.random.normal(kw, (Cout, Cin, ksize, ksize), dtype=jnp.float32) * 0.1
    gamma = 1.0 + 0.1 * jax.random.normal(kg, (Cout,), dtype=jnp.float32)
    beta = 0.1 * jax.random.normal(kb, (Cout,), dtype=jnp.float32)

    fwd = jax.jit(functools.partial(base_conv_forward, ksize=ksize, stride=stride))
    out = jax.block_until_ready(fwd(x, weight, gamma, beta))
    assert out.shape == (N, Cout, H, W), out.shape

    # Tight check against a reference with bf16-rounded conv operands (same precision
    # the MXU sees), loose check against the pure-f32 module semantics.
    ref_bf16 = _reference(x, weight, gamma, beta, ksize=ksize, stride=stride,
                          conv_operand_dtype=jnp.bfloat16)
    ref_f32 = _reference(x, weight, gamma, beta, ksize=ksize, stride=stride)
    assert jnp.allclose(out, ref_bf16, atol=1e-2, rtol=1e-2), float(
        jnp.max(jnp.abs(out - ref_bf16)))
    assert jnp.allclose(out, ref_f32, atol=1e-1, rtol=1e-1), float(
        jnp.max(jnp.abs(out - ref_f32)))

    print("KERNEL_OK")
</pallas_src>

<mosaic_0001>
module attributes {stable_mosaic.version = 11 : i64} {
  func.func @_stats_kernel(%arg0: i32, %arg1: i32, %arg2: i32, %arg3: memref<256x128xbf16, #tpu.memory_space<vmem>>, %arg4: memref<128x128xbf16, #tpu.memory_space<vmem>>, %arg5: memref<16x128xf32, #tpu.memory_space<vmem>>, %arg6: memref<256x128xf32, #tpu.memory_space<vmem>>) attributes {dimension_semantics = [#tpu.dimension_semantics<parallel>, #tpu.dimension_semantics<arbitrary>, #tpu.dimension_semantics<arbitrary>], iteration_bounds = array<i64: 2, 1, 1>, scalar_prefetch = 0 : i64, scratch_operands = 1 : i64, tpu.core_type = #tpu.core_type<tc>, window_params = [{transform_indices = @transform_0, window_bounds = array<i64: 256, 128>}, {transform_indices = @transform_1, window_bounds = array<i64: 128, 128>}, {transform_indices = @transform_2, window_bounds = array<i64: 16, 128>}]} {
    %c0_i32 = arith.constant 0 : i32
    %0 = arith.cmpi eq, %arg1, %c0_i32 : i32
    %c0_i32_0 = arith.constant 0 : i32
    %1 = arith.cmpi eq, %arg2, %c0_i32_0 : i32
    %2 = arith.andi %0, %1 : i1
    %3 = arith.extui %2 : i1 to i32
    %c0_i32_1 = arith.constant 0 : i32
    %4 = arith.cmpi ne, %3, %c0_i32_1 : i32
    scf.if %4 {
      %cst_13 = arith.constant 0.000000e+00 : f32
      %17 = vector.broadcast %cst_13 : f32 to vector<16x128xf32>
      %c0_14 = arith.constant 0 : index
      %c0_15 = arith.constant 0 : index
      %18 = vector.load %arg5[%c0_14, %c0_15] : memref<16x128xf32, #tpu.memory_space<vmem>>, vector<16x128xf32>
      tpu.vector_store %arg5[%c0_14, %c0_15], %17 {strides = array<i32>} : memref<16x128xf32, #tpu.memory_space<vmem>>, vector<16x128xf32>,
    } else {
    }
    %c0_i32_2 = arith.constant 0 : i32
    %5 = arith.cmpi eq, %arg2, %c0_i32_2 : i32
    %6 = arith.extui %5 : i1 to i32
    %c0_i32_3 = arith.constant 0 : i32
    %7 = arith.cmpi ne, %6, %c0_i32_3 : i32
    scf.if %7 {
      %cst_13 = arith.constant 0.000000e+00 : f32
      %17 = vector.broadcast %cst_13 : f32 to vector<256x128xf32>
      %c0_14 = arith.constant 0 : index
      %c0_15 = arith.constant 0 : index
      %18 = vector.load %arg6[%c0_14, %c0_15] : memref<256x128xf32, #tpu.memory_space<vmem>>, vector<256x128xf32>
      tpu.vector_store %arg6[%c0_14, %c0_15], %17 {strides = array<i32>} : memref<256x128xf32, #tpu.memory_space<vmem>>, vector<256x128xf32>,
    } else {
    }
    %c0 = arith.constant 0 : index
    %c0_4 = arith.constant 0 : index
    %8 = vector.load %arg6[%c0, %c0_4] : memref<256x128xf32, #tpu.memory_space<vmem>>, vector<256x128xf32>
    %c0_5 = arith.constant 0 : index
    %c0_6 = arith.constant 0 : index
    %9 = vector.load %arg3[%c0_5, %c0_6] : memref<256x128xbf16, #tpu.memory_space<vmem>>, vector<256x128xbf16>
    %c0_7 = arith.constant 0 : index
    %c0_8 = arith.constant 0 : index
    %10 = vector.load %arg4[%c0_7, %c0_8] : memref<128x128xbf16, #tpu.memory_space<vmem>>, vector<128x128xbf16>
    %cst = arith.constant dense<0.000000e+00> : vector<256x128xf32>
    %11 = tpu.matmul %9, %10, %cst {dimension_numbers = #tpu.dot_dimension_numbers<[1], [0], [0], [1], [0, 0, 1, 1], [], []>} : vector<256x128xbf16>, vector<128x128xbf16>, vector<256x128xf32> -> vector<256x128xf32>
    %12 = arith.addf %8, %11 : vector<256x128xf32>
    %c0_9 = arith.constant 0 : index
    %c0_10 = arith.constant 0 : index
    %13 = vector.load %arg6[%c0_9, %c0_10] : memref<256x128xf32, #tpu.memory_space<vmem>>, vector<256x128xf32>
    tpu.vector_store %arg6[%c0_9, %c0_10], %12 {strides = array<i32>} : memref<256x128xf32, #tpu.memory_space<vmem>>, vector<256x128xf32>,
    %c0_i32_11 = arith.constant 0 : i32
    %14 = arith.cmpi eq, %arg2, %c0_i32_11 : i32
    %15 = arith.extui %14 : i1 to i32
    %c0_i32_12 = arith.constant 0 : i32
    %16 = arith.cmpi ne, %15, %c0_i32_12 : i32
    scf.if %16 {
      %c0_13 = arith.constant 0 : index
      %c0_14 = arith.constant 0 : index
      %17 = vector.load %arg6[%c0_13, %c0_14] : memref<256x128xf32, #tpu.memory_space<vmem>>, vector<256x128xf32>
      %cst_15 = arith.constant 1.000000e+00 : f32
      %18 = vector.broadcast %cst_15 : f32 to vector<8x256xf32>
      %c0_16 = arith.constant 0 : index
      %c0_17 = arith.constant 0 : index
      %19 = vector.load %arg5[%c0_16, %c0_17] : memref<16x128xf32, #tpu.memory_space<vmem>>, vector<8x128xf32>
      %cst_18 = arith.constant dense<0.000000e+00> : vector<8x128xf32>
      %20 = tpu.matmul %18, %17, %cst_18 {dimension_numbers = #tpu.dot_dimension_numbers<[1], [0], [0], [1], [0, 0, 1, 1], [], []>} : vector<8x256xf32>, vector<256x128xf32>, vector<8x128xf32> -> vector<8x128xf32>
      %21 = arith.addf %19, %20 : vector<8x128xf32>
      %c0_19 = arith.constant 0 : index
      %c0_20 = arith.constant 0 : index
      %22 = vector.load %arg5[%c0_19, %c0_20] : memref<16x128xf32, #tpu.memory_space<vmem>>, vector<8x128xf32>
      tpu.vector_store %arg5[%c0_19, %c0_20], %21 {strides = array<i32>} : memref<16x128xf32, #tpu.memory_space<vmem>>, vector<8x128xf32>,
      %c8 = arith.constant 8 : index
      %c0_21 = arith.constant 0 : index
      %23 = vector.load %arg5[%c8, %c0_21] : memref<16x128xf32, #tpu.memory_space<vmem>>, vector<8x128xf32>
      %24 = arith.mulf %17, %17 : vector<256x128xf32>
      %cst_22 = arith.constant dense<0.000000e+00> : vector<8x128xf32>
      %25 = tpu.matmul %18, %24, %cst_22 {dimension_numbers = #tpu.dot_dimension_numbers<[1], [0], [0], [1], [0, 0, 1, 1], [], []>} : vector<8x256xf32>, vector<256x128xf32>, vector<8x128xf32> -> vector<8x128xf32>
      %26 = arith.addf %23, %25 : vector<8x128xf32>
      %c8_23 = arith.constant 8 : index
      %c0_24 = arith.constant 0 : index
      %27 = vector.load %arg5[%c8_23, %c0_24] : memref<16x128xf32, #tpu.memory_space<vmem>>, vector<8x128xf32>
      tpu.vector_store %arg5[%c8_23, %c0_24], %26 {strides = array<i32>} : memref<16x128xf32, #tpu.memory_space<vmem>>, vector<8x128xf32>,
    } else {
    }
    return
  }
  func.func @transform_0(%arg0: i32, %arg1: i32, %arg2: i32) -> (i32, i32) {
    %c1_i32 = arith.constant 1 : i32
    %0 = arith.muli %arg0, %c1_i32 : i32
    %1 = arith.addi %0, %arg1 : i32
    %c0_i32 = arith.constant 0 : i32
    return %1, %arg2 : i32, i32
  }
  func.func @transform_1(%arg0: i32, %arg1: i32, %arg2: i32) -> (i32, i32) {
    %c0_i32 = arith.constant 0 : i32
    %c0_i32_0 = arith.constant 0 : i32
    return %arg2, %c0_i32 : i32, i32
  }
  func.func @transform_2(%arg0: i32, %arg1: i32, %arg2: i32) -> (i32, i32) {
    %c0_i32 = arith.constant 0 : i32
    %c0_i32_0 = arith.constant 0 : i32
    return %arg0, %c0_i32 : i32, i32
  }
}

module attributes {stable_mosaic.version = 11 : i64} {
  func.func @_conv_bn_relu_kernel(%arg0: i32, %arg1: i32, %arg2: memref<256x128xbf16, #tpu.memory_space<vmem>>, %arg3: memref<128x128xbf16, #tpu.memory_space<vmem>>, %arg4: memref<1x128xf32, #tpu.memory_space<vmem>>, %arg5: memref<1x128xf32, #tpu.memory_space<vmem>>, %arg6: memref<256x128xf32, #tpu.memory_space<vmem>>, %arg7: memref<256x128xf32, #tpu.memory_space<vmem>>) attributes {dimension_semantics = [#tpu.dimension_semantics<parallel>, #tpu.dimension_semantics<arbitrary>], iteration_bounds = array<i64: 2, 1>, scalar_prefetch = 0 : i64, scratch_operands = 1 : i64, tpu.core_type = #tpu.core_type<tc>, window_params = [{transform_indices = @transform_0, window_bounds = array<i64: 256, 128>}, {transform_indices = @transform_1, window_bounds = array<i64: 128, 128>}, {pipeline_mode = #tpu.pipeline_mode<synchronous>, transform_indices = @transform_2, window_bounds = array<i64: 1, 128>}, {pipeline_mode = #tpu.pipeline_mode<synchronous>, transform_indices = @transform_3, window_bounds = array<i64: 1, 128>}, {transform_indices = @transform_4, window_bounds = array<i64: 256, 128>}]} {
    %c0_i32 = arith.constant 0 : i32
    %0 = arith.cmpi eq, %arg1, %c0_i32 : i32
    %1 = arith.extui %0 : i1 to i32
    %c0_i32_0 = arith.constant 0 : i32
    %2 = arith.cmpi ne, %1, %c0_i32_0 : i32
    scf.if %2 {
      %cst_10 = arith.constant 0.000000e+00 : f32
      %12 = vector.broadcast %cst_10 : f32 to vector<256x128xf32>
      %c0_11 = arith.constant 0 : index
      %c0_12 = arith.constant 0 : index
      %13 = vector.load %arg7[%c0_11, %c0_12] : memref<256x128xf32, #tpu.memory_space<vmem>>, vector<256x128xf32>
      tpu.vector_store %arg7[%c0_11, %c0_12], %12 {strides = array<i32>} : memref<256x128xf32, #tpu.memory_space<vmem>>, vector<256x128xf32>,
    } else {
    }
    %c0 = arith.constant 0 : index
    %c0_1 = arith.constant 0 : index
    %3 = vector.load %arg7[%c0, %c0_1] : memref<256x128xf32, #tpu.memory_space<vmem>>, vector<256x128xf32>
    %c0_2 = arith.constant 0 : index
    %c0_3 = arith.constant 0 : index
    %4 = vector.load %arg2[%c0_2, %c0_3] : memref<256x128xbf16, #tpu.memory_space<vmem>>, vector<256x128xbf16>
    %c0_4 = arith.constant 0 : index
    %c0_5 = arith.constant 0 : index
    %5 = vector.load %arg3[%c0_4, %c0_5] : memref<128x128xbf16, #tpu.memory_space<vmem>>, vector<128x128xbf16>
    %cst = arith.constant dense<0.000000e+00> : vector<256x128xf32>
    %6 = tpu.matmul %4, %5, %cst {dimension_numbers = #tpu.dot_dimension_numbers<[1], [0], [0], [1], [0, 0, 1, 1], [], []>} : vector<256x128xbf16>, vector<128x128xbf16>, vector<256x128xf32> -> vector<256x128xf32>
    %7 = arith.addf %3, %6 : vector<256x128xf32>
    %c0_6 = arith.constant 0 : index
    %c0_7 = arith.constant 0 : index
    %8 = vector.load %arg7[%c0_6, %c0_7] : memref<256x128xf32, #tpu.memory_space<vmem>>, vector<256x128xf32>
    tpu.vector_store %arg7[%c0_6, %c0_7], %7 {strides = array<i32>} : memref<256x128xf32, #tpu.memory_space<vmem>>, vector<256x128xf32>,
    %c0_i32_8 = arith.constant 0 : i32
    %9 = arith.cmpi eq, %arg1, %c0_i32_8 : i32
    %10 = arith.extui %9 : i1 to i32
    %c0_i32_9 = arith.constant 0 : i32
    %11 = arith.cmpi ne, %10, %c0_i32_9 : i32
    scf.if %11 {
      %c0_10 = arith.constant 0 : index
      %c0_11 = arith.constant 0 : index
      %12 = vector.load %arg7[%c0_10, %c0_11] : memref<256x128xf32, #tpu.memory_space<vmem>>, vector<256x128xf32>
      %c0_12 = arith.constant 0 : index
      %c0_13 = arith.constant 0 : index
      %13 = vector.load %arg4[%c0_12, %c0_13] : memref<1x128xf32, #tpu.memory_space<vmem>>, vector<1x128xf32>
      %14 = vector.broadcast %13 : vector<1x128xf32> to vector<256x128xf32>
      %15 = arith.mulf %12, %14 : vector<256x128xf32>
      %c0_14 = arith.constant 0 : index
      %c0_15 = arith.constant 0 : index
      %16 = vector.load %arg5[%c0_14, %c0_15] : memref<1x128xf32, #tpu.memory_space<vmem>>, vector<1x128xf32>
      %17 = vector.broadcast %16 : vector<1x128xf32> to vector<256x128xf32>
      %18 = arith.addf %15, %17 : vector<256x128xf32>
      %cst_16 = arith.constant 0.000000e+00 : f32
      %19 = vector.broadcast %cst_16 : f32 to vector<256x128xf32>
      %20 = arith.maximumf %18, %19 : vector<256x128xf32>
      %c0_17 = arith.constant 0 : index
      %c0_18 = arith.constant 0 : index
      %21 = vector.load %arg6[%c0_17, %c0_18] : memref<256x128xf32, #tpu.memory_space<vmem>>, vector<256x128xf32>
      tpu.vector_store %arg6[%c0_17, %c0_18], %20 {strides = array<i32>} : memref<256x128xf32, #tpu.memory_space<vmem>>, vector<256x128xf32>,
    } else {
    }
    return
  }
  func.func @transform_0(%arg0: i32, %arg1: i32) -> (i32, i32) {
    %c0_i32 = arith.constant 0 : i32
    return %arg0, %arg1 : i32, i32
  }
  func.func @transform_1(%arg0: i32, %arg1: i32) -> (i32, i32) {
    %c0_i32 = arith.constant 0 : i32
    %c0_i32_0 = arith.constant 0 : i32
    return %arg1, %c0_i32 : i32, i32
  }
  func.func @transform_2(%arg0: i32, %arg1: i32) -> (i32, i32) {
    %c0_i32 = arith.constant 0 : i32
    %c0_i32_0 = arith.constant 0 : i32
    %c0_i32_1 = arith.constant 0 : i32
    return %c0_i32, %c0_i32_0 : i32, i32
  }
  func.func @transform_3(%arg0: i32, %arg1: i32) -> (i32, i32) {
    %c0_i32 = arith.constant 0 : i32
    %c0_i32_0 = arith.constant 0 : i32
    %c0_i32_1 = arith.constant 0 : i32
    return %c0_i32, %c0_i32_0 : i32, i32
  }
  func.func @transform_4(%arg0: i32, %arg1: i32) -> (i32, i32) {
    %c0_i32 = arith.constant 0 : i32
    %c0_i32_0 = arith.constant 0 : i32
    return %arg0, %c0_i32 : i32, i32
  }
}

</mosaic_0001>

<llo_original>
// kernel: base_conv_forward.2
$region0: #{base_conv_forward.2}
  #allocation0 [shape = 'u32[]', space=smem, size = 0x4, offset = 0x4, fixed_abs, tag = 'smem constant byte address 0x4 - core index']
  #allocation1 [shape = 'u32[72,128]{1,0:T(1,128)}', space=vmem, size = 0x9000, scoped, tag = 'internal scratch']
  #allocation2 [shape = 'f32[256,128]{1,0:T(8,128)}', space=vmem, size = 0x20000, scoped, tag = 'scratch operand']
  %s0 = inlined_call_operand.vmem [shape: bf16[512,128], index: 0, kind: input, shape index: {}]
  %s1 = inlined_call_operand.vmem [shape: bf16[128,128], index: 1, kind: input, shape index: {}]
  %s2 = inlined_call_operand.vmem [shape: f32[32,128], index: 2, kind: output, shape index: {}]
  %s3 = sld [smem:[#allocation0]]
  $region53: #{base_conv_forward.2} parent=0
    _
  %s5 = ssub.s32 1, %s3
  %s6 = scalar_select 0, %s5, %s3
  loop: start=0, step=1, limit=4
  $region2: #{base_conv_forward.2} parent=0 // loop_pre_header
    _
  $region3: #{base_conv_forward.2} parent=0 // loop_header
    %s8 = sphi 0, %s12
    %p9 = scmp.ge.s32.totalorder %s8, 4
    %s15 = sphi 0, %s34
    %s16 = sphi 0, %s30
    %s17 = sphi 0, %s26
    %s18 = sphi 0, %s15
    %s19 = sphi 0, %s16
    %s20 = sphi 0, %s17
    %s21 = sphi 0, %s18
    %s22 = sphi 0, %s19
    %s23 = sphi 0, %s20
    %s41 = sphi 0, %s43
    %s44 = sphi 0, %s41
    %s45 = sphi 0, %s44
    %s61 = sphi 0, %s45
    %s67 = sphi 0, %s69
    %s70 = sphi 0, %s67
    %s71 = sphi 0, %s70
    %s87 = sphi 0, %s71
    %s93 = sphi 0, %s95
    %s96 = sphi 0, %s93
    %s97 = sphi 0, %s96
    %s113 = sphi 0, %s97
  $region4: #{base_conv_forward.2} parent=0 // loop_header_branch
    %11 = sbr.rel (%p9) target = $region8
  $region5: #{base_conv_forward.2} parent=0 // loop_body
    %s13 = ssub.s32 %s8, 1
    %s14 = ssub.s32 %s8, 2
    %s24 = sadd.s32 1, %s17
    %p25 = scmp.ge.s32.totalorder %s24, 1
    %s26 = scalar_select %p25, 0, %s24
    %s27 = sadd.s32 1, %s16
    %s28 = scalar_select %p25, %s27, %s16
    %p29 = scmp.ge.s32.totalorder %s28, 1
    %s30 = scalar_select %p29, 0, %s28
    %s31 = sadd.s32 1, %s15
    %s32 = scalar_select %p29, %s31, %s15
    %p33 = scmp.ge.s32.totalorder %s32, 2
    %s34 = scalar_select %p33, 0, %s32
    %s35 = sadd.s32 %s15, %s16
    %s36 = sadd.s32 %s34, %s30
    %s37 = ssub.s32 %s35, %s36
    %s38 = ssub.s32 %s17, %s26
    %s39 = sor.u32 %s37, %s38
    %p40 = scmp.eq.s32.totalorder %s39, 0
    %s42 = sadd.s32 %s41, 1
    %s43 = scalar_select %p40, %s41, %s42
    %p46 = pneg %p40
    %p47 = scmp.eq.s32.totalorder %s8, 1
    %p48 = por %p46, %p47
    %p49 = scmp.ne.s32.totalorder %s41, %s44
    %p50 = scmp.eq.s32.totalorder %s8, 0
    %p51 = por %p49, %p50
    %p52 = scmp.ne.s32.totalorder %s41, %s44
    %p53 = scmp.eq.s32.totalorder %s13, 1
    %p54 = por %p52, %p53
    %p55 = scmp.ne.s32.totalorder %s44, %s45
    %p56 = scmp.eq.s32.totalorder %s13, 0
    %p57 = por %p55, %p56
    %p58 = scmp.ne.s32.totalorder %s44, %s45
    %p59 = scmp.eq.s32.totalorder %s14, 1
    %p60 = por %p58, %p59
    %p62 = scmp.ne.s32.totalorder %s45, %s61
    %p63 = scmp.eq.s32.totalorder %s14, 0
    %p64 = por %p62, %p63
    %s65 = ssub.s32 %s17, %s26
    %p66 = scmp.eq.s32.totalorder %s65, 0
    %s68 = sadd.s32 %s67, 1
    %s69 = scalar_select %p66, %s67, %s68
    %p72 = pneg %p66
    %p73 = scmp.eq.s32.totalorder %s8, 1
    %p74 = por %p72, %p73
    %p75 = scmp.ne.s32.totalorder %s67, %s70
    %p76 = scmp.eq.s32.totalorder %s8, 0
    %p77 = por %p75, %p76
    %p78 = scmp.ne.s32.totalorder %s67, %s70
    %p79 = scmp.eq.s32.totalorder %s13, 1
    %p80 = por %p78, %p79
    %p81 = scmp.ne.s32.totalorder %s70, %s71
    %p82 = scmp.eq.s32.totalorder %s13, 0
    %p83 = por %p81, %p82
    %p84 = scmp.ne.s32.totalorder %s70, %s71
    %p85 = scmp.eq.s32.totalorder %s14, 1
    %p86 = por %p84, %p85
    %p88 = scmp.ne.s32.totalorder %s71, %s87
    %p89 = scmp.eq.s32.totalorder %s14, 0
    %p90 = por %p88, %p89
    %s91 = ssub.s32 %s15, %s34
    %p92 = scmp.eq.s32.totalorder %s91, 0
    %s94 = sadd.s32 %s93, 1
    %s95 = scalar_select %p92, %s93, %s94
    %p98 = pneg %p92
    %p99 = scmp.eq.s32.totalorder %s8, 1
    %p100 = por %p98, %p99
    %p101 = scmp.ne.s32.totalorder %s93, %s96
    %p102 = scmp.eq.s32.totalorder %s8, 0
    %p103 = por %p101, %p102
    %p104 = scmp.ne.s32.totalorder %s93, %s96
    %p105 = scmp.eq.s32.totalorder %s13, 1
    %p106 = por %p104, %p105
    %p107 = scmp.ne.s32.totalorder %s96, %s97
    %p108 = scmp.eq.s32.totalorder %s13, 0
    %p109 = por %p107, %p108
    %p110 = scmp.ne.s32.totalorder %s96, %s97
    %p111 = scmp.eq.s32.totalorder %s14, 1
    %p112 = por %p110, %p111
    %p114 = scmp.ne.s32.totalorder %s97, %s113
    %p115 = scmp.eq.s32.totalorder %s14, 0
    %p116 = por %p114, %p115
    %p117 = scmp.le.s32.totalorder 1, %s8
    %p118 = scmp.lt.s32.totalorder %s8, 3
    %p119 = pnand %p117, %p118
    %p120 = pneg %p119
    // Predicated region
    $region9: #{base_conv_forward.2} parent=5 // pred_check
      _
    $region10: #{base_conv_forward.2} parent=5 // pred_check_branch
      %122 = sbr.rel (%p119) target = $region12
    $region11: #{base_conv_forward.2} parent=5 // pred_region
      %s123 = ssub.s32 %s8, 1
      // Predicated region
      $region13: #{base_conv_forward.2} parent=11 // pred_check
        %p124 = pneg %p83
      $region14: #{base_conv_forward.2} parent=11 // pred_check_branch
        %126 = sbr.rel (%p124) target = $region16
      $region15: #{base_conv_forward.2} parent=11 // pred_region
        %s127 = smul.u32 16, %s20
        %p128 = scmp.lt.s32.totalorder %s127, 15
        %s129 = scalar_select %p128, %s127, 15
        %s130 = smul.addr %s129, 4
        %s131 = scalar_lea.vmem %s1, %s130
        %s132 = smul.u32 16, %s20
      $region16: #{base_conv_forward.2} parent=11 // pred_fallthru
        _
    $region12: #{base_conv_forward.2} parent=5 // pred_fallthru
      _
    %p133 = scmp.lt.s32.totalorder %s8, 2
    // Predicated region
    $region17: #{base_conv_forward.2} parent=5 // pred_check
      %p134 = pneg %p133
    $region18: #{base_conv_forward.2} parent=5 // pred_check_branch
      %136 = sbr.rel (%p134) target = $region20
    $region19: #{base_conv_forward.2} parent=5 // pred_region
      // Predicated region
      $region21: #{base_conv_forward.2} parent=19 // pred_check
        %p137 = pneg %p51
      $region22: #{base_conv_forward.2} parent=19 // pred_check_branch
        %139 = sbr.rel (%p137) target = $region24
      $region23: #{base_conv_forward.2} parent=19 // pred_region
        %s140 = sadd.s32 %s15, %s16
        %s141 = smul.u32 32, %s140
        %p142 = scmp.lt.s32.totalorder %s141, 63
        %s143 = scalar_select %p142, %s141, 63
        %p144 = scmp.lt.s32.totalorder %s17, 0
        %s145 = scalar_select %p144, %s17, 0
        %s146 = sadd.s32 %s145, %s143
        %s147 = smul.addr %s146, 4
        %s148 = scalar_lea.vmem %s0, %s147
        %s149 = sadd.s32 %s15, %s16
        %s150 = smul.u32 32, %s149
      $region24: #{base_conv_forward.2} parent=19 // pred_fallthru
        _
    $region20: #{base_conv_forward.2} parent=5 // pred_fallthru
      _
    %p151 = scmp.le.s32.totalorder 1, %s8
    %p152 = scmp.lt.s32.totalorder %s8, 3
    %p153 = pnand %p151, %p152
    %p154 = pneg %p153
    // Predicated region
    $region25: #{base_conv_forward.2} parent=5 // pred_check
      _
    $region26: #{base_conv_forward.2} parent=5 // pred_check_branch
      %156 = sbr.rel (%p153) target = $region28
    $region27: #{base_conv_forward.2} parent=5 // pred_region
      %s157 = ssub.s32 %s8, 1
      %s158 = sadd.s32 %s18, %s19
      %s159 = smul.u32 32, %s158
      %p160 = scmp.lt.s32.totalorder %s159, 63
      %s161 = scalar_select %p160, %s159, 63
      %p162 = scmp.lt.s32.totalorder %s20, 0
      %s163 = scalar_select %p162, %s20, 0
      %s164 = sadd.s32 %s163, %s161
      %s165 = smul.addr %s164, 4
      %s166 = scalar_lea.vmem %s0, %s165
      %p167 = pneg %p57
      %p168 = pneg %p54
      %s169 = smul.u32 16, %s20
      %p170 = scmp.lt.s32.totalorder %s169, 15
      %s171 = scalar_select %p170, %s169, 15
      %s172 = smul.addr %s171, 4
      %s173 = scalar_lea.vmem %s1, %s172
      %p174 = pneg %p83
      %p175 = pneg %p80
      %p176 = pneg %p109
      %p177 = pneg %p106
      %s178 = smul.u32 2, %s18
      %p179 = scmp.lt.s32.totalorder %s178, 3
      %s180 = scalar_select %p179, %s178, 3
      %s181 = smul.addr %s180, 8
      %s182 = scalar_lea.vmem %s2, %s181
      %s183 = sadd.s32 %s18, %s19
      %s184 = smul.u32 32, %s183
      %p185 = scmp.lt.s32.totalorder %s184, 63
      %s186 = scalar_select %p185, %s184, 63
      %p187 = scmp.lt.s32.totalorder %s20, 0
      %s188 = scalar_select %p187, %s20, 0
      %s189 = sadd.s32 %s188, %s186
      %s190 = smul.addr %s189, 4
      %s191 = scalar_lea.vmem %s0, %s190
      %s192 = sadd.s32 %s18, %s19
      %s193 = smul.u32 32, %s192
      %s194 = smul.u32 16, %s20
      %p195 = scmp.lt.s32.totalorder %s194, 15
      %s196 = scalar_select %p195, %s194, 15
      %s197 = smul.addr %s196, 4
      %s198 = scalar_lea.vmem %s1, %s197
      %s199 = smul.u32 16, %s20
      %s200 = smul.u32 2, %s18
      %p201 = scmp.lt.s32.totalorder %s200, 3
      %s202 = scalar_select %p201, %s200, 3
      %s203 = smul.addr %s202, 8
      %s204 = scalar_lea.vmem %s2, %s203
      %s205 = smul.u32 2, %s18
      %p206 = scmp.eq.s32.totalorder %s19, 0
      %p207 = scmp.eq.s32.totalorder %s20, 0
      %p208 = pnand %p206, %p207
      %p209 = pneg %p208
      // Predicated region
      $region29: #{base_conv_forward.2} parent=27 // pred_check
        _
      $region30: #{base_conv_forward.2} parent=27 // pred_check_branch
        %211 = sbr.rel (%p208) target = $region32
      $region31: #{base_conv_forward.2} parent=27 // pred_region
        %212 = vst [vmem:[%s204] sm:$0xff] 0.0
        %213 = vst [vmem:[%s204 + $0x8] sm:$0xff] 0.0
      $region32: #{base_conv_forward.2} parent=27 // pred_fallthru
        _
      // Predicated region
      $region33: #{base_conv_forward.2} parent=27 // pred_check
        %p214 = pneg %p207
      $region34: #{base_conv_forward.2} parent=27 // pred_check_branch
        %216 = sbr.rel (%p214) target = $region36
      $region35: #{base_conv_forward.2} parent=27 // pred_region
        %217 = vst [vmem:[#allocation2] sm:$0xff] 0.0
        %218 = vst [vmem:[#allocation2 + $0x8] sm:$0xff] 0.0
        %219 = vst [vmem:[#allocation2 + $0x10] sm:$0xff] 0.0
        %220 = vst [vmem:[#allocation2 + $0x18] sm:$0xff] 0.0
        %221 = vst [vmem:[#allocation2 + $0x20] sm:$0xff] 0.0
        %222 = vst [vmem:[#allocation2 + $0x28] sm:$0xff] 0.0
        %223 = vst [vmem:[#allocation2 + $0x30] sm:$0xff] 0.0
        %224 = vst [vmem:[#allocation2 + $0x38] sm:$0xff] 0.0
        %225 = vst [vmem:[#allocation2 + $0x40] sm:$0xff] 0.0
        %226 = vst [vmem:[#allocation2 + $0x48] sm:$0xff] 0.0
        %227 = vst [vmem:[#allocation2 + $0x50] sm:$0xff] 0.0
        %228 = vst [vmem:[#allocation2 + $0x58] sm:$0xff] 0.0
        %229 = vst [vmem:[#allocation2 + $0x60] sm:$0xff] 0.0
        %230 = vst [vmem:[#allocation2 + $0x68] sm:$0xff] 0.0
        %231 = vst [vmem:[#allocation2 + $0x70] sm:$0xff] 0.0
        %232 = vst [vmem:[#allocation2 + $0x78] sm:$0xff] 0.0
        %233 = vst [vmem:[#allocation2 + $0x80] sm:$0xff] 0.0
        %234 = vst [vmem:[#allocation2 + $0x88] sm:$0xff] 0.0
        %235 = vst [vmem:[#allocation2 + $0x90] sm:$0xff] 0.0
        %236 = vst [vmem:[#allocation2 + $0x98] sm:$0xff] 0.0
        %237 = vst [vmem:[#allocation2 + $0xa0] sm:$0xff] 0.0
        %238 = vst [vmem:[#allocation2 + $0xa8] sm:$0xff] 0.0
        %239 = vst [vmem:[#allocation2 + $0xb0] sm:$0xff] 0.0
        %240 = vst [vmem:[#allocation2 + $0xb8] sm:$0xff] 0.0
        %241 = vst [vmem:[#allocation2 + $0xc0] sm:$0xff] 0.0
        %242 = vst [vmem:[#allocation2 + $0xc8] sm:$0xff] 0.0
        %243 = vst [vmem:[#allocation2 + $0xd0] sm:$0xff] 0.0
        %244 = vst [vmem:[#allocation2 + $0xd8] sm:$0xff] 0.0
        %245 = vst [vmem:[#allocation2 + $0xe0] sm:$0xff] 0.0
        %246 = vst [vmem:[#allocation2 + $0xe8] sm:$0xff] 0.0
        %247 = vst [vmem:[#allocation2 + $0xf0] sm:$0xff] 0.0
        %248 = vst [vmem:[#allocation2 + $0xf8] sm:$0xff] 0.0
      $region36: #{base_conv_forward.2} parent=27 // pred_fallthru
        _
      %v249 = vld [vmem:[#allocation2] sm:$0xff]
      %v250 = vld [vmem:[#allocation2 + $0x8] sm:$0xff]
      %v251 = vld [vmem:[#allocation2 + $0x10] sm:$0xff]
      %v252 = vld [vmem:[#allocation2 + $0x18] sm:$0xff]
      %v253 = vld [vmem:[#allocation2 + $0x20] sm:$0xff]
      %v254 = vld [vmem:[#allocation2 + $0x28] sm:$0xff]
      %v255 = vld [vmem:[#allocation2 + $0x30] sm:$0xff]
      %v256 = vld [vmem:[#allocation2 + $0x38] sm:$0xff]
      %v257 = vld [vmem:[#allocation2 + $0x40] sm:$0xff]
      %v258 = vld [vmem:[#allocation2 + $0x48] sm:$0xff]
      %v259 = vld [vmem:[#allocation2 + $0x50] sm:$0xff]
      %v260 = vld [vmem:[#allocation2 + $0x58] sm:$0xff]
      %v261 = vld [vmem:[#allocation2 + $0x60] sm:$0xff]
      %v262 = vld [vmem:[#allocation2 + $0x68] sm:$0xff]
      %v263 = vld [vmem:[#allocation2 + $0x70] sm:$0xff]
      %v264 = vld [vmem:[#allocation2 + $0x78] sm:$0xff]
      %v265 = vld [vmem:[#allocation2 + $0x80] sm:$0xff]
      %v266 = vld [vmem:[#allocation2 + $0x88] sm:$0xff]
      %v267 = vld [vmem:[#allocation2 + $0x90] sm:$0xff]
      %v268 = vld [vmem:[#allocation2 + $0x98] sm:$0xff]
      %v269 = vld [vmem:[#allocation2 + $0xa0] sm:$0xff]
      %v270 = vld [vmem:[#allocation2 + $0xa8] sm:$0xff]
      %v271 = vld [vmem:[#allocation2 + $0xb0] sm:$0xff]
      %v272 = vld [vmem:[#allocation2 + $0xb8] sm:$0xff]
      %v273 = vld [vmem:[#allocation2 + $0xc0] sm:$0xff]
      %v274 = vld [vmem:[#allocation2 + $0xc8] sm:$0xff]
      %v275 = vld [vmem:[#allocation2 + $0xd0] sm:$0xff]
      %v276 = vld [vmem:[#allocation2 + $0xd8] sm:$0xff]
      %v277 = vld [vmem:[#allocation2 + $0xe0] sm:$0xff]
      %v278 = vld [vmem:[#allocation2 + $0xe8] sm:$0xff]
      %v279 = vld [vmem:[#allocation2 + $0xf0] sm:$0xff]
      %v280 = vld [vmem:[#allocation2 + $0xf8] sm:$0xff]
      %v281 = vld [vmem:[%s191] sm:$0xf]
      %v282 = vld [vmem:[%s191 + $0x4] sm:$0xf]
      %v283 = vld [vmem:[%s191 + $0x8] sm:$0xf]
      %v284 = vld [vmem:[%s191 + $0xc] sm:$0xf]
      %v285 = vld [vmem:[%s191 + $0x10] sm:$0xf]
      %v286 = vld [vmem:[%s191 + $0x14] sm:$0xf]
      %v287 = vld [vmem:[%s191 + $0x18] sm:$0xf]
      %v288 = vld [vmem:[%s191 + $0x1c] sm:$0xf]
      %v289 = vld [vmem:[%s191 + $0x20] sm:$0xf]
      %v290 = vld [vmem:[%s191 + $0x24] sm:$0xf]
      %v291 = vld [vmem:[%s191 + $0x28] sm:$0xf]
      %v292 = vld [vmem:[%s191 + $0x2c] sm:$0xf]
      %v293 = vld [vmem:[%s191 + $0x30] sm:$0xf]
      %v294 = vld [vmem:[%s191 + $0x34] sm:$0xf]
      %v295 = vld [vmem:[%s191 + $0x38] sm:$0xf]
      %v296 = vld [vmem:[%s191 + $0x3c] sm:$0xf]
      %v297 = vld [vmem:[%s191 + $0x40] sm:$0xf]
      %v298 = vld [vmem:[%s191 + $0x44] sm:$0xf]
      %v299 = vld [vmem:[%s191 + $0x48] sm:$0xf]
      %v300 = vld [vmem:[%s191 + $0x4c] sm:$0xf]
      %v301 = vld [vmem:[%s191 + $0x50] sm:$0xf]
      %v302 = vld [vmem:[%s191 + $0x54] sm:$0xf]
      %v303 = vld [vmem:[%s191 + $0x58] sm:$0xf]
      %v304 = vld [vmem:[%s191 + $0x5c] sm:$0xf]
      %v305 = vld [vmem:[%s191 + $0x60] sm:$0xf]
      %v306 = vld [vmem:[%s191 + $0x64] sm:$0xf]
      %v307 = vld [vmem:[%s191 + $0x68] sm:$0xf]
      %v308 = vld [vmem:[%s191 + $0x6c] sm:$0xf]
      %v309 = vld [vmem:[%s191 + $0x70] sm:$0xf]
      %v310 = vld [vmem:[%s191 + $0x74] sm:$0xf]
      %v311 = vld [vmem:[%s191 + $0x78] sm:$0xf]
      %v312 = vld [vmem:[%s191 + $0x7c] sm:$0xf]
      %v313 = vld [vmem:[%s198] sm:$0xf]
      %v314 = vld [vmem:[%s198 + $0x4] sm:$0xf]
      %v315 = vld [vmem:[%s198 + $0x8] sm:$0xf]
      %v316 = vld [vmem:[%s198 + $0xc] sm:$0xf]
      %v317 = vld [vmem:[%s198 + $0x10] sm:$0xf]
      %v318 = vld [vmem:[%s198 + $0x14] sm:$0xf]
      %v319 = vld [vmem:[%s198 + $0x18] sm:$0xf]
      %v320 = vld [vmem:[%s198 + $0x1c] sm:$0xf]
      %v321 = vld [vmem:[%s198 + $0x20] sm:$0xf]
      %v322 = vld [vmem:[%s198 + $0x24] sm:$0xf]
      %v323 = vld [vmem:[%s198 + $0x28] sm:$0xf]
      %v324 = vld [vmem:[%s198 + $0x2c] sm:$0xf]
      %v325 = vld [vmem:[%s198 + $0x30] sm:$0xf]
      %v326 = vld [vmem:[%s198 + $0x34] sm:$0xf]
      %v327 = vld [vmem:[%s198 + $0x38] sm:$0xf]
      %v328 = vld [vmem:[%s198 + $0x3c] sm:$0xf]
      %v361 = vunpack.c.l.b16 %v281
      %v362 = vunpack.c.l.b16 %v282
      %v363 = vunpack.c.l.b16 %v283
      %v364 = vunpack.c.l.b16 %v284
      %v365 = vunpack.c.l.b16 %v285
      %v366 = vunpack.c.l.b16 %v286
      %v367 = vunpack.c.l.b16 %v287
      %v368 = vunpack.c.l.b16 %v288
      %v369 = vunpack.c.l.b16 %v289
      %v370 = vunpack.c.l.b16 %v290
      %v371 = vunpack.c.l.b16 %v291
      %v372 = vunpack.c.l.b16 %v292
      %v373 = vunpack.c.l.b16 %v293
      %v374 = vunpack.c.l.b16 %v294
      %v375 = vunpack.c.l.b16 %v295
      %v376 = vunpack.c.l.b16 %v296
      %v377 = vunpack.c.l.b16 %v297
      %v378 = vunpack.c.l.b16 %v298
      %v379 = vunpack.c.l.b16 %v299
      %v380 = vunpack.c.l.b16 %v300
      %v381 = vunpack.c.l.b16 %v301
      %v382 = vunpack.c.l.b16 %v302
      %v383 = vunpack.c.l.b16 %v303
      %v384 = vunpack.c.l.b16 %v304
      %v385 = vunpack.c.l.b16 %v305
      %v386 = vunpack.c.l.b16 %v306
      %v387 = vunpack.c.l.b16 %v307
      %v388 = vunpack.c.l.b16 %v308
      %v389 = vunpack.c.l.b16 %v309
      %v390 = vunpack.c.l.b16 %v310
      %v391 = vunpack.c.l.b16 %v311
      %v392 = vunpack.c.l.b16 %v312
      %v393 = vpack.c.b16 %v362, %v361
      %v394 = vpack.c.b16 %v364, %v363
      %v395 = vpack.c.b16 %v366, %v365
      %v396 = vpack.c.b16 %v368, %v367
      %v397 = vpack.c.b16 %v370, %v369
      %v398 = vpack.c.b16 %v372, %v371
      %v399 = vpack.c.b16 %v374, %v373
      %v400 = vpack.c.b16 %v376, %v375
      %v401 = vpack.c.b16 %v378, %v377
      %v402 = vpack.c.b16 %v380, %v379
      %v403 = vpack.c.b16 %v382, %v381
      %v404 = vpack.c.b16 %v384, %v383
      %v405 = vpack.c.b16 %v386, %v385
      %v406 = vpack.c.b16 %v388, %v387
      %v407 = vpack.c.b16 %v390, %v389
      %v408 = vpack.c.b16 %v392, %v391
      %v441 = vunpack.c.l.b16 %v313
      %v442 = vunpack.c.l.b16 %v314
      %v443 = vunpack.c.l.b16 %v315
      %v444 = vunpack.c.l.b16 %v316
      %v445 = vunpack.c.l.b16 %v317
      %v446 = vunpack.c.l.b16 %v318
      %v447 = vunpack.c.l.b16 %v319
      %v448 = vunpack.c.l.b16 %v320
      %v449 = vunpack.c.l.b16 %v321
      %v450 = vunpack.c.l.b16 %v322
      %v451 = vunpack.c.l.b16 %v323
      %v452 = vunpack.c.l.b16 %v324
      %v453 = vunpack.c.l.b16 %v325
      %v454 = vunpack.c.l.b16 %v326
      %v455 = vunpack.c.l.b16 %v327
      %v456 = vunpack.c.l.b16 %v328
      %v457 = vpack.c.b16 %v442, %v441
      %v458 = vpack.c.b16 %v444, %v443
      %v459 = vpack.c.b16 %v446, %v445
      %v460 = vpack.c.b16 %v448, %v447
      %v461 = vpack.c.b16 %v450, %v449
      %v462 = vpack.c.b16 %v452, %v451
      %v463 = vpack.c.b16 %v454, %v453
      %v464 = vpack.c.b16 %v456, %v455
      %473 = vmatpush.bf16.msra.mxu0 %v464
      %474 = vmatpush.bf16.msra.mxu0 %v463
      %475 = vmatpush.bf16.msra.mxu0 %v462
      %476 = vmatpush.bf16.msra.mxu0 %v461
      %477 = vmatpush.bf16.msra.mxu0 %v460
      %478 = vmatpush.bf16.msra.mxu0 %v459
      %479 = vmatpush.bf16.msra.mxu0 %v458
      %480 = vmatpush.bf16.msra.mxu0 %v457
      %481 = vmatmul.bf16.gmra.mxu0 %v393
      %v482 = vpop.f32.mrf.mxu0
      %v483 = vadd.f32 0.0, %v482
      %v484 = vpop.f32.mrf.mxu0
      %v485 = vadd.f32 0.0, %v484
      %486 = vmatmul.bf16.gmra.mxu0 %v394
      %v487 = vpop.f32.mrf.mxu0
      %v488 = vadd.f32 0.0, %v487
      %v489 = vpop.f32.mrf.mxu0
      %v490 = vadd.f32 0.0, %v489
      %491 = vmatmul.bf16.gmra.mxu0 %v395
      %v492 = vpop.f32.mrf.mxu0
      %v493 = vadd.f32 0.0, %v492
      %v494 = vpop.f32.mrf.mxu0
      %v495 = vadd.f32 0.0, %v494
      %496 = vmatmul.bf16.gmra.mxu0 %v396
      %v497 = vpop.f32.mrf.mxu0
      %v498 = vadd.f32 0.0, %v497
      %v499 = vpop.f32.mrf.mxu0
      %v500 = vadd.f32 0.0, %v499
      %501 = vmatmul.bf16.gmra.mxu0 %v397
      %v502 = vpop.f32.mrf.mxu0
      %v503 = vadd.f32 0.0, %v502
      %v504 = vpop.f32.mrf.mxu0
      %v505 = vadd.f32 0.0, %v504
      %506 = vmatmul.bf16.gmra.mxu0 %v398
      %v507 = vpop.f32.mrf.mxu0
      %v508 = vadd.f32 0.0, %v507
      %v509 = vpop.f32.mrf.mxu0
      %v510 = vadd.f32 0.0, %v509
      %511 = vmatmul.bf16.gmra.mxu0 %v399
      %v512 = vpop.f32.mrf.mxu0
      %v513 = vadd.f32 0.0, %v512
      %v514 = vpop.f32.mrf.mxu0
      %v515 = vadd.f32 0.0, %v514
      %516 = vmatmul.bf16.gmra.mxu0 %v400
      %v517 = vpop.f32.mrf.mxu0
      %v518 = vadd.f32 0.0, %v517
      %v519 = vpop.f32.mrf.mxu0
      %v520 = vadd.f32 0.0, %v519
      %521 = vmatmul.bf16.gmra.mxu0 %v401
      %v522 = vpop.f32.mrf.mxu0
      %v523 = vadd.f32 0.0, %v522
      %v524 = vpop.f32.mrf.mxu0
      %v525 = vadd.f32 0.0, %v524
      %526 = vmatmul.bf16.gmra.mxu0 %v402
      %v527 = vpop.f32.mrf.mxu0
      %v528 = vadd.f32 0.0, %v527
      %v529 = vpop.f32.mrf.mxu0
      %v530 = vadd.f32 0.0, %v529
      %531 = vmatmul.bf16.gmra.mxu0 %v403
      %v532 = vpop.f32.mrf.mxu0
      %v533 = vadd.f32 0.0, %v532
      %v534 = vpop.f32.mrf.mxu0
      %v535 = vadd.f32 0.0, %v534
      %536 = vmatmul.bf16.gmra.mxu0 %v404
      %v537 = vpop.f32.mrf.mxu0
      %v538 = vadd.f32 0.0, %v537
      %v539 = vpop.f32.mrf.mxu0
      %v540 = vadd.f32 0.0, %v539
      %541 = vmatmul.bf16.gmra.mxu0 %v405
      %v542 = vpop.f32.mrf.mxu0
      %v543 = vadd.f32 0.0, %v542
      %v544 = vpop.f32.mrf.mxu0
      %v545 = vadd.f32 0.0, %v544
      %546 = vmatmul.bf16.gmra.mxu0 %v406
      %v547 = vpop.f32.mrf.mxu0
      %v548 = vadd.f32 0.0, %v547
      %v549 = vpop.f32.mrf.mxu0
      %v550 = vadd.f32 0.0, %v549
      %551 = vmatmul.bf16.gmra.mxu0 %v407
      %v552 = vpop.f32.mrf.mxu0
      %v553 = vadd.f32 0.0, %v552
      %v554 = vpop.f32.mrf.mxu0
      %v555 = vadd.f32 0.0, %v554
      %556 = vmatmul.bf16.gmra.mxu0 %v408
      %v557 = vpop.f32.mrf.mxu0
      %v558 = vadd.f32 0.0, %v557
      %v559 = vpop.f32.mrf.mxu0
      %v560 = vadd.f32 0.0, %v559
      %561 = vdwg.mxu0
      %v562 = vadd.f32 %v249, %v483
      %v563 = vadd.f32 %v250, %v485
      %v564 = vadd.f32 %v251, %v488
      %v565 = vadd.f32 %v252, %v490
      %v566 = vadd.f32 %v253, %v493
      %v567 = vadd.f32 %v254, %v495
      %v568 = vadd.f32 %v255, %v498
      %v569 = vadd.f32 %v256, %v500
      %v570 = vadd.f32 %v257, %v503
      %v571 = vadd.f32 %v258, %v505
      %v572 = vadd.f32 %v259, %v508
      %v573 = vadd.f32 %v260, %v510
      %v574 = vadd.f32 %v261, %v513
      %v575 = vadd.f32 %v262, %v515
      %v576 = vadd.f32 %v263, %v518
      %v577 = vadd.f32 %v264, %v520
      %v578 = vadd.f32 %v265, %v523
      %v579 = vadd.f32 %v266, %v525
      %v580 = vadd.f32 %v267, %v528
      %v581 = vadd.f32 %v268, %v530
      %v582 = vadd.f32 %v269, %v533
      %v583 = vadd.f32 %v270, %v535
      %v584 = vadd.f32 %v271, %v538
      %v585 = vadd.f32 %v272, %v540
      %v586 = vadd.f32 %v273, %v543
      %v587 = vadd.f32 %v274, %v545
      %v588 = vadd.f32 %v275, %v548
      %v589 = vadd.f32 %v276, %v550
      %v590 = vadd.f32 %v277, %v553
      %v591 = vadd.f32 %v278, %v555
      %v592 = vadd.f32 %v279, %v558
      %v593 = vadd.f32 %v280, %v560
      %594 = vst [vmem:[#allocation2] sm:$0xff] %v562
      %595 = vst [vmem:[#allocation2 + $0x8] sm:$0xff] %v563
      %596 = vst [vmem:[#allocation2 + $0x10] sm:$0xff] %v564
      %597 = vst [vmem:[#allocation2 + $0x18] sm:$0xff] %v565
      %598 = vst [vmem:[#allocation2 + $0x20] sm:$0xff] %v566
      %599 = vst [vmem:[#allocation2 + $0x28] sm:$0xff] %v567
      %600 = vst [vmem:[#allocation2 + $0x30] sm:$0xff] %v568
      %601 = vst [vmem:[#allocation2 + $0x38] sm:$0xff] %v569
      %602 = vst [vmem:[#allocation2 + $0x40] sm:$0xff] %v570
      %603 = vst [vmem:[#allocation2 + $0x48] sm:$0xff] %v571
      %604 = vst [vmem:[#allocation2 + $0x50] sm:$0xff] %v572
      %605 = vst [vmem:[#allocation2 + $0x58] sm:$0xff] %v573
      %606 = vst [vmem:[#allocation2 + $0x60] sm:$0xff] %v574
      %607 = vst [vmem:[#allocation2 + $0x68] sm:$0xff] %v575
      %608 = vst [vmem:[#allocation2 + $0x70] sm:$0xff] %v576
      %609 = vst [vmem:[#allocation2 + $0x78] sm:$0xff] %v577
      %610 = vst [vmem:[#allocation2 + $0x80] sm:$0xff] %v578
      %611 = vst [vmem:[#allocation2 + $0x88] sm:$0xff] %v579
      %612 = vst [vmem:[#allocation2 + $0x90] sm:$0xff] %v580
      %613 = vst [vmem:[#allocation2 + $0x98] sm:$0xff] %v581
      %614 = vst [vmem:[#allocation2 + $0xa0] sm:$0xff] %v582
      %615 = vst [vmem:[#allocation2 + $0xa8] sm:$0xff] %v583
      %616 = vst [vmem:[#allocation2 + $0xb0] sm:$0xff] %v584
      %617 = vst [vmem:[#allocation2 + $0xb8] sm:$0xff] %v585
      %618 = vst [vmem:[#allocation2 + $0xc0] sm:$0xff] %v586
      %619 = vst [vmem:[#allocation2 + $0xc8] sm:$0xff] %v587
      %620 = vst [vmem:[#allocation2 + $0xd0] sm:$0xff] %v588
      %621 = vst [vmem:[#allocation2 + $0xd8] sm:$0xff] %v589
      %622 = vst [vmem:[#allocation2 + $0xe0] sm:$0xff] %v590
      %623 = vst [vmem:[#allocation2 + $0xe8] sm:$0xff] %v591
      %624 = vst [vmem:[#allocation2 + $0xf0] sm:$0xff] %v592
      %625 = vst [vmem:[#allocation2 + $0xf8] sm:$0xff] %v593
      // Predicated region
      $region37: #{base_conv_forward.2} parent=27 // pred_check
        %p626 = pneg %p207
      $region38: #{base_conv_forward.2} parent=27 // pred_check_branch
        %628 = sbr.rel (%p626) target = $region40
      $region39: #{base_conv_forward.2} parent=27 // pred_region
        %v629 = vld [vmem:[#allocation2] sm:$0xff]
        %v630 = vld [vmem:[#allocation2 + $0x8] sm:$0xff]
        %v631 = vld [vmem:[#allocation2 + $0x10] sm:$0xff]
        %v632 = vld [vmem:[#allocation2 + $0x18] sm:$0xff]
        %v633 = vld [vmem:[#allocation2 + $0x20] sm:$0xff]
        %v634 = vld [vmem:[#allocation2 + $0x28] sm:$0xff]
        %v635 = vld [vmem:[#allocation2 + $0x30] sm:$0xff]
        %v636 = vld [vmem:[#allocation2 + $0x38] sm:$0xff]
        %v637 = vld [vmem:[#allocation2 + $0x40] sm:$0xff]
        %v638 = vld [vmem:[#allocation2 + $0x48] sm:$0xff]
        %v639 = vld [vmem:[#allocation2 + $0x50] sm:$0xff]
        %v640 = vld [vmem:[#allocation2 + $0x58] sm:$0xff]
        %v641 = vld [vmem:[#allocation2 + $0x60] sm:$0xff]
        %v642 = vld [vmem:[#allocation2 + $0x68] sm:$0xff]
        %v643 = vld [vmem:[#allocation2 + $0x70] sm:$0xff]
        %v644 = vld [vmem:[#allocation2 + $0x78] sm:$0xff]
        %v645 = vld [vmem:[#allocation2 + $0x80] sm:$0xff]
        %v646 = vld [vmem:[#allocation2 + $0x88] sm:$0xff]
        %v647 = vld [vmem:[#allocation2 + $0x90] sm:$0xff]
        %v648 = vld [vmem:[#allocation2 + $0x98] sm:$0xff]
        %v649 = vld [vmem:[#allocation2 + $0xa0] sm:$0xff]
        %v650 = vld [vmem:[#allocation2 + $0xa8] sm:$0xff]
        %v651 = vld [vmem:[#allocation2 + $0xb0] sm:$0xff]
        %v652 = vld [vmem:[#allocation2 + $0xb8] sm:$0xff]
        %v653 = vld [vmem:[#allocation2 + $0xc0] sm:$0xff]
        %v654 = vld [vmem:[#allocation2 + $0xc8] sm:$0xff]
        %v655 = vld [vmem:[#allocation2 + $0xd0] sm:$0xff]
        %v656 = vld [vmem:[#allocation2 + $0xd8] sm:$0xff]
        %v657 = vld [vmem:[#allocation2 + $0xe0] sm:$0xff]
        %v658 = vld [vmem:[#allocation2 + $0xe8] sm:$0xff]
        %v659 = vld [vmem:[#allocation2 + $0xf0] sm:$0xff]
        %v660 = vld [vmem:[#allocation2 + $0xf8] sm:$0xff]
        %v661 = vld [vmem:[%s204] sm:$0xff]
        %662 = vmatpush.msra.mxu0 %v644
        %663 = vmatpush.msra.mxu0 %v643
        %664 = vmatpush.msra.mxu0 %v642
        %665 = vmatpush.msra.mxu0 %v641
        %666 = vmatpush.msra.mxu0 %v640
        %667 = vmatpush.msra.mxu0 %v639
        %668 = vmatpush.msra.mxu0 %v638
        %669 = vmatpush.msra.mxu0 %v637
        %670 = vmatpush.msra.mxu0 %v636
        %671 = vmatpush.msra.mxu0 %v635
        %672 = vmatpush.msra.mxu0 %v634
        %673 = vmatpush.msra.mxu0 %v633
        %674 = vmatpush.msra.mxu0 %v632
        %675 = vmatpush.msra.mxu0 %v631
        %676 = vmatpush.msra.mxu0 %v630
        %677 = vmatpush.msra.mxu0 %v629
        %678 = vmatmul.f32.gmra.mxu0 1.0
        %v679 = vpop.f32.mrf.mxu0
        %v680 = vadd.f32 0.0, %v679
        %681 = vdwg.mxu0
        %682 = vmatpush.msra.mxu0 %v660
        %683 = vmatpush.msra.mxu0 %v659
        %684 = vmatpush.msra.mxu0 %v658
        %685 = vmatpush.msra.mxu0 %v657
        %686 = vmatpush.msra.mxu0 %v656
        %687 = vmatpush.msra.mxu0 %v655
        %688 = vmatpush.msra.mxu0 %v654
        %689 = vmatpush.msra.mxu0 %v653
        %690 = vmatpush.msra.mxu0 %v652
        %691 = vmatpush.msra.mxu0 %v651
        %692 = vmatpush.msra.mxu0 %v650
        %693 = vmatpush.msra.mxu0 %v649
        %694 = vmatpush.msra.mxu0 %v648
        %695 = vmatpush.msra.mxu0 %v647
        %696 = vmatpush.msra.mxu0 %v646
        %697 = vmatpush.msra.mxu0 %v645
        %698 = vmatmul.f32.gmra.mxu0 1.0
        %v699 = vpop.f32.mrf.mxu0
        %v700 = vadd.f32 %v680, %v699
        %701 = vdwg.mxu0
        %v702 = vadd.f32 %v661, %v700
        %703 = vst [vmem:[%s204] sm:$0xff] %v702
        %v704 = vld [vmem:[%s204 + $0x8] sm:$0xff]
        %v705 = vmul.f32 %v629, %v629
        %v706 = vmul.f32 %v630, %v630
        %v707 = vmul.f32 %v631, %v631
        %v708 = vmul.f32 %v632, %v632
        %v709 = vmul.f32 %v633, %v633
        %v710 = vmul.f32 %v634, %v634
        %v711 = vmul.f32 %v635, %v635
        %v712 = vmul.f32 %v636, %v636
        %v713 = vmul.f32 %v637, %v637
        %v714 = vmul.f32 %v638, %v638
        %v715 = vmul.f32 %v639, %v639
        %v716 = vmul.f32 %v640, %v640
        %v717 = vmul.f32 %v641, %v641
        %v718 = vmul.f32 %v642, %v642
        %v719 = vmul.f32 %v643, %v643
        %v720 = vmul.f32 %v644, %v644
        %v721 = vmul.f32 %v645, %v645
        %v722 = vmul.f32 %v646, %v646
        %v723 = vmul.f32 %v647, %v647
        %v724 = vmul.f32 %v648, %v648
        %v725 = vmul.f32 %v649, %v649
        %v726 = vmul.f32 %v650, %v650
        %v727 = vmul.f32 %v651, %v651
        %v728 = vmul.f32 %v652, %v652
        %v729 = vmul.f32 %v653, %v653
        %v730 = vmul.f32 %v654, %v654
        %v731 = vmul.f32 %v655, %v655
        %v732 = vmul.f32 %v656, %v656
        %v733 = vmul.f32 %v657, %v657
        %v734 = vmul.f32 %v658, %v658
        %v735 = vmul.f32 %v659, %v659
        %v736 = vmul.f32 %v660, %v660
        %737 = vmatpush.msra.mxu0 %v720
        %738 = vmatpush.msra.mxu0 %v719
        %739 = vmatpush.msra.mxu0 %v718
        %740 = vmatpush.msra.mxu0 %v717
        %741 = vmatpush.msra.mxu0 %v716
        %742 = vmatpush.msra.mxu0 %v715
        %743 = vmatpush.msra.mxu0 %v714
        %744 = vmatpush.msra.mxu0 %v713
        %745 = vmatpush.msra.mxu0 %v712
        %746 = vmatpush.msra.mxu0 %v711
        %747 = vmatpush.msra.mxu0 %v710
        %748 = vmatpush.msra.mxu0 %v709
        %749 = vmatpush.msra.mxu0 %v708
        %750 = vmatpush.msra.mxu0 %v707
        %751 = vmatpush.msra.mxu0 %v706
        %752 = vmatpush.msra.mxu0 %v705
        %753 = vmatmul.f32.gmra.mxu0 1.0
        %v754 = vpop.f32.mrf.mxu0
        %v755 = vadd.f32 0.0, %v754
        %756 = vdwg.mxu0
        %757 = vmatpush.msra.mxu0 %v736
        %758 = vmatpush.msra.mxu0 %v735
        %759 = vmatpush.msra.mxu0 %v734
        %760 = vmatpush.msra.mxu0 %v733
        %761 = vmatpush.msra.mxu0 %v732
        %762 = vmatpush.msra.mxu0 %v731
        %763 = vmatpush.msra.mxu0 %v730
        %764 = vmatpush.msra.mxu0 %v729
        %765 = vmatpush.msra.mxu0 %v728
        %766 = vmatpush.msra.mxu0 %v727
        %767 = vmatpush.msra.mxu0 %v726
        %768 = vmatpush.msra.mxu0 %v725
        %769 = vmatpush.msra.mxu0 %v724
        %770 = vmatpush.msra.mxu0 %v723
        %771 = vmatpush.msra.mxu0 %v722
        %772 = vmatpush.msra.mxu0 %v721
        %773 = vmatmul.f32.gmra.mxu0 1.0
        %v774 = vpop.f32.mrf.mxu0
        %v775 = vadd.f32 %v755, %v774
        %776 = vdwg.mxu0
        %v777 = vadd.f32 %v704, %v775
        %778 = vst [vmem:[%s204 + $0x8] sm:$0xff] %v777
      $region40: #{base_conv_forward.2} parent=27 // pred_fallthru
        _
      %s779 = smul.u32 2, %s18
      %p780 = scmp.lt.s32.totalorder %s779, 3
      %s781 = scalar_select %p780, %s779, 3
      %s782 = smul.addr %s781, 8
      %s783 = scalar_lea.vmem %s2, %s782
      // Predicated region
      $region41: #{base_conv_forward.2} parent=27 // pred_check
        %p784 = pneg %p106
      $region42: #{base_conv_forward.2} parent=27 // pred_check_branch
        %786 = sbr.rel (%p784) target = $region44
      $region43: #{base_conv_forward.2} parent=27 // pred_region
        %s787 = smul.u32 2, %s18
      $region44: #{base_conv_forward.2} parent=27 // pred_fallthru
        _
    $region28: #{base_conv_forward.2} parent=5 // pred_fallthru
      _
    %p788 = scmp.le.s32.totalorder 2, %s8
    // Predicated region
    $region45: #{base_conv_forward.2} parent=5 // pred_check
      %p789 = pneg %p788
    $region46: #{base_conv_forward.2} parent=5 // pred_check_branch
      %791 = sbr.rel (%p789) target = $region48
    $region47: #{base_conv_forward.2} parent=5 // pred_region
      %s792 = ssub.s32 %s8, 2
      // Predicated region
      $region49: #{base_conv_forward.2} parent=47 // pred_check
        %p793 = pneg %p112
      $region50: #{base_conv_forward.2} parent=47 // pred_check_branch
        %795 = sbr.rel (%p793) target = $region52
      $region51: #{base_conv_forward.2} parent=47 // pred_region
        %s796 = smul.u32 2, %s21
        %p797 = scmp.lt.s32.totalorder %s796, 3
        %s798 = scalar_select %p797, %s796, 3
        %s799 = smul.addr %s798, 8
        %s800 = scalar_lea.vmem %s2, %s799
      $region52: #{base_conv_forward.2} parent=47 // pred_fallthru
        _
    $region48: #{base_conv_forward.2} parent=5 // pred_fallthru
      _
  $region6: #{base_conv_forward.2} parent=0 // loop_footer
    %s12 = sadd.s32 1, %s8
  $region7: #{base_conv_forward.2} parent=0 // loop_footer_branch
    %7 = sbr.rel target = $region3
  $region8: #{base_conv_forward.2} parent=0 // loop_exit
    _

// kernel: base_conv_forward.3
$region0: #{base_conv_forward.3}
  #allocation0 [shape = 'u32[]', space=smem, size = 0x4, offset = 0x4, fixed_abs, tag = 'smem constant byte address 0x4 - core index']
  #allocation1 [shape = 'u32[72,128]{1,0:T(1,128)}', space=vmem, size = 0x9000, scoped, tag = 'internal scratch']
  #allocation2 [shape = 'f32[256,128]{1,0:T(8,128)}', space=vmem, size = 0x20000, scoped, tag = 'scratch operand']
  %s0 = inlined_call_operand.vmem [shape: bf16[512,128], index: 0, kind: input, shape index: {}]
  %s1 = inlined_call_operand.vmem [shape: bf16[128,128], index: 1, kind: input, shape index: {}]
  %s2 = inlined_call_operand.vmem [shape: f32[1,128], index: 2, kind: input, shape index: {}]
  %s3 = inlined_call_operand.vmem [shape: f32[1,128], index: 3, kind: input, shape index: {}]
  %s4 = inlined_call_operand.vmem [shape: f32[512,128], index: 4, kind: output, shape index: {}]
  %s5 = sld [smem:[#allocation0]]
  $region57: #{base_conv_forward.3} parent=0
    _
  %s7 = ssub.s32 1, %s5
  %s8 = scalar_select 0, %s7, %s5
  loop: start=0, step=1, limit=4
  $region2: #{base_conv_forward.3} parent=0 // loop_pre_header
    _
  $region3: #{base_conv_forward.3} parent=0 // loop_header
    %s10 = sphi 0, %s14
    %p11 = scmp.ge.s32.totalorder %s10, 4
    %s17 = sphi 0, %s29
    %s18 = sphi 0, %s25
    %s19 = sphi 0, %s17
    %s20 = sphi 0, %s18
    %s21 = sphi 0, %s19
    %s22 = sphi 0, %s20
    %s34 = sphi 0, %s36
    %s37 = sphi 0, %s34
    %s38 = sphi 0, %s37
    %s54 = sphi 0, %s38
    %s60 = sphi 0, %s62
    %s63 = sphi 0, %s60
    %s64 = sphi 0, %s63
    %s80 = sphi 0, %s64
    %s84 = sphi 0, %s84
    %s86 = sphi 0, %s84
    %s87 = sphi 0, %s86
    %s101 = sphi 0, %s87
    %s105 = sphi 0, %s105
    %s107 = sphi 0, %s105
    %s108 = sphi 0, %s107
    %s122 = sphi 0, %s108
    %s128 = sphi 0, %s130
    %s131 = sphi 0, %s128
    %s132 = sphi 0, %s131
    %s148 = sphi 0, %s132
  $region4: #{base_conv_forward.3} parent=0 // loop_header_branch
    %13 = sbr.rel (%p11) target = $region8
  $region5: #{base_conv_forward.3} parent=0 // loop_body
    %s15 = ssub.s32 %s10, 1
    %s16 = ssub.s32 %s10, 2
    %s23 = sadd.s32 1, %s18
    %p24 = scmp.ge.s32.totalorder %s23, 1
    %s25 = scalar_select %p24, 0, %s23
    %s26 = sadd.s32 1, %s17
    %s27 = scalar_select %p24, %s26, %s17
    %p28 = scmp.ge.s32.totalorder %s27, 2
    %s29 = scalar_select %p28, 0, %s27
    %s30 = ssub.s32 %s17, %s29
    %s31 = ssub.s32 %s18, %s25
    %s32 = sor.u32 %s30, %s31
    %p33 = scmp.eq.s32.totalorder %s32, 0
    %s35 = sadd.s32 %s34, 1
    %s36 = scalar_select %p33, %s34, %s35
    %p39 = pneg %p33
    %p40 = scmp.eq.s32.totalorder %s10, 1
    %p41 = por %p39, %p40
    %p42 = scmp.ne.s32.totalorder %s34, %s37
    %p43 = scmp.eq.s32.totalorder %s10, 0
    %p44 = por %p42, %p43
    %p45 = scmp.ne.s32.totalorder %s34, %s37
    %p46 = scmp.eq.s32.totalorder %s15, 1
    %p47 = por %p45, %p46
    %p48 = scmp.ne.s32.totalorder %s37, %s38
    %p49 = scmp.eq.s32.totalorder %s15, 0
    %p50 = por %p48, %p49
    %p51 = scmp.ne.s32.totalorder %s37, %s38
    %p52 = scmp.eq.s32.totalorder %s16, 1
    %p53 = por %p51, %p52
    %p55 = scmp.ne.s32.totalorder %s38, %s54
    %p56 = scmp.eq.s32.totalorder %s16, 0
    %p57 = por %p55, %p56
    %s58 = ssub.s32 %s18, %s25
    %p59 = scmp.eq.s32.totalorder %s58, 0
    %s61 = sadd.s32 %s60, 1
    %s62 = scalar_select %p59, %s60, %s61
    %p65 = pneg %p59
    %p66 = scmp.eq.s32.totalorder %s10, 1
    %p67 = por %p65, %p66
    %p68 = scmp.ne.s32.totalorder %s60, %s63
    %p69 = scmp.eq.s32.totalorder %s10, 0
    %p70 = por %p68, %p69
    %p71 = scmp.ne.s32.totalorder %s60, %s63
    %p72 = scmp.eq.s32.totalorder %s15, 1
    %p73 = por %p71, %p72
    %p74 = scmp.ne.s32.totalorder %s63, %s64
    %p75 = scmp.eq.s32.totalorder %s15, 0
    %p76 = por %p74, %p75
    %p77 = scmp.ne.s32.totalorder %s63, %s64
    %p78 = scmp.eq.s32.totalorder %s16, 1
    %p79 = por %p77, %p78
    %p81 = scmp.ne.s32.totalorder %s64, %s80
    %p82 = scmp.eq.s32.totalorder %s16, 0
    %p83 = por %p81, %p82
    %s85 = sadd.s32 %s84, 1
    %p88 = scmp.eq.s32.totalorder %s10, 1
    %p89 = scmp.ne.s32.totalorder %s84, %s86
    %p90 = scmp.eq.s32.totalorder %s10, 0
    %p91 = por %p89, %p90
    %p92 = scmp.ne.s32.totalorder %s84, %s86
    %p93 = scmp.eq.s32.totalorder %s15, 1
    %p94 = por %p92, %p93
    %p95 = scmp.ne.s32.totalorder %s86, %s87
    %p96 = scmp.eq.s32.totalorder %s15, 0
    %p97 = por %p95, %p96
    %p98 = scmp.ne.s32.totalorder %s86, %s87
    %p99 = scmp.eq.s32.totalorder %s16, 1
    %p100 = por %p98, %p99
    %p102 = scmp.ne.s32.totalorder %s87, %s101
    %p103 = scmp.eq.s32.totalorder %s16, 0
    %p104 = por %p102, %p103
    %s106 = sadd.s32 %s105, 1
    %p109 = scmp.eq.s32.totalorder %s10, 1
    %p110 = scmp.ne.s32.totalorder %s105, %s107
    %p111 = scmp.eq.s32.totalorder %s10, 0
    %p112 = por %p110, %p111
    %p113 = scmp.ne.s32.totalorder %s105, %s107
    %p114 = scmp.eq.s32.totalorder %s15, 1
    %p115 = por %p113, %p114
    %p116 = scmp.ne.s32.totalorder %s107, %s108
    %p117 = scmp.eq.s32.totalorder %s15, 0
    %p118 = por %p116, %p117
    %p119 = scmp.ne.s32.totalorder %s107, %s108
    %p120 = scmp.eq.s32.totalorder %s16, 1
    %p121 = por %p119, %p120
    %p123 = scmp.ne.s32.totalorder %s108, %s122
    %p124 = scmp.eq.s32.totalorder %s16, 0
    %p125 = por %p123, %p124
    %s126 = ssub.s32 %s17, %s29
    %p127 = scmp.eq.s32.totalorder %s126, 0
    %s129 = sadd.s32 %s128, 1
    %s130 = scalar_select %p127, %s128, %s129
    %p133 = pneg %p127
    %p134 = scmp.eq.s32.totalorder %s10, 1
    %p135 = por %p133, %p134
    %p136 = scmp.ne.s32.totalorder %s128, %s131
    %p137 = scmp.eq.s32.totalorder %s10, 0
    %p138 = por %p136, %p137
    %p139 = scmp.ne.s32.totalorder %s128, %s131
    %p140 = scmp.eq.s32.totalorder %s15, 1
    %p141 = por %p139, %p140
    %p142 = scmp.ne.s32.totalorder %s131, %s132
    %p143 = scmp.eq.s32.totalorder %s15, 0
    %p144 = por %p142, %p143
    %p145 = scmp.ne.s32.totalorder %s131, %s132
    %p146 = scmp.eq.s32.totalorder %s16, 1
    %p147 = por %p145, %p146
    %p149 = scmp.ne.s32.totalorder %s132, %s148
    %p150 = scmp.eq.s32.totalorder %s16, 0
    %p151 = por %p149, %p150
    %p152 = scmp.le.s32.totalorder 1, %s10
    %p153 = scmp.lt.s32.totalorder %s10, 3
    %p154 = pnand %p152, %p153
    %p155 = pneg %p154
    // Predicated region
    $region9: #{base_conv_forward.3} parent=5 // pred_check
      _
    $region10: #{base_conv_forward.3} parent=5 // pred_check_branch
      %157 = sbr.rel (%p154) target = $region12
    $region11: #{base_conv_forward.3} parent=5 // pred_region
      %s158 = ssub.s32 %s10, 1
      // Predicated region
      $region13: #{base_conv_forward.3} parent=11 // pred_check
        %p159 = pneg %p76
      $region14: #{base_conv_forward.3} parent=11 // pred_check_branch
        %161 = sbr.rel (%p159) target = $region16
      $region15: #{base_conv_forward.3} parent=11 // pred_region
        %s162 = smul.u32 16, %s20
        %p163 = scmp.lt.s32.totalorder %s162, 15
        %s164 = scalar_select %p163, %s162, 15
        %s165 = smul.addr %s164, 4
        %s166 = scalar_lea.vmem %s1, %s165
        %s167 = smul.u32 16, %s20
      $region16: #{base_conv_forward.3} parent=11 // pred_fallthru
        _
      // Predicated region
      $region17: #{base_conv_forward.3} parent=11 // pred_check
        %p168 = pneg %p97
      $region18: #{base_conv_forward.3} parent=11 // pred_check_branch
        %170 = sbr.rel (%p168) target = $region20
      $region19: #{base_conv_forward.3} parent=11 // pred_region
        _
      $region20: #{base_conv_forward.3} parent=11 // pred_fallthru
        _
      // Predicated region
      $region21: #{base_conv_forward.3} parent=11 // pred_check
        %p171 = pneg %p118
      $region22: #{base_conv_forward.3} parent=11 // pred_check_branch
        %173 = sbr.rel (%p171) target = $region24
      $region23: #{base_conv_forward.3} parent=11 // pred_region
        _
      $region24: #{base_conv_forward.3} parent=11 // pred_fallthru
        _
    $region12: #{base_conv_forward.3} parent=5 // pred_fallthru
      _
    %p174 = scmp.lt.s32.totalorder %s10, 2
    // Predicated region
    $region25: #{base_conv_forward.3} parent=5 // pred_check
      %p175 = pneg %p174
    $region26: #{base_conv_forward.3} parent=5 // pred_check_branch
      %177 = sbr.rel (%p175) target = $region28
    $region27: #{base_conv_forward.3} parent=5 // pred_region
      // Predicated region
      $region29: #{base_conv_forward.3} parent=27 // pred_check
        %p178 = pneg %p44
      $region30: #{base_conv_forward.3} parent=27 // pred_check_branch
        %180 = sbr.rel (%p178) target = $region32
      $region31: #{base_conv_forward.3} parent=27 // pred_region
        %s181 = smul.u32 32, %s17
        %p182 = scmp.lt.s32.totalorder %s181, 63
        %s183 = scalar_select %p182, %s181, 63
        %p184 = scmp.lt.s32.totalorder %s18, 0
        %s185 = scalar_select %p184, %s18, 0
        %s186 = sadd.s32 %s185, %s183
        %s187 = smul.addr %s186, 4
        %s188 = scalar_lea.vmem %s0, %s187
        %s189 = smul.u32 32, %s17
      $region32: #{base_conv_forward.3} parent=27 // pred_fallthru
        _
    $region28: #{base_conv_forward.3} parent=5 // pred_fallthru
      _
    %p190 = scmp.le.s32.totalorder 1, %s10
    %p191 = scmp.lt.s32.totalorder %s10, 3
    %p192 = pnand %p190, %p191
    %p193 = pneg %p192
    // Predicated region
    $region33: #{base_conv_forward.3} parent=5 // pred_check
      _
    $region34: #{base_conv_forward.3} parent=5 // pred_check_branch
      %195 = sbr.rel (%p192) target = $region36
    $region35: #{base_conv_forward.3} parent=5 // pred_region
      %s196 = ssub.s32 %s10, 1
      %s197 = smul.u32 32, %s19
      %p198 = scmp.lt.s32.totalorder %s197, 63
      %s199 = scalar_select %p198, %s197, 63
      %p200 = scmp.lt.s32.totalorder %s20, 0
      %s201 = scalar_select %p200, %s20, 0
      %s202 = sadd.s32 %s201, %s199
      %s203 = smul.addr %s202, 4
      %s204 = scalar_lea.vmem %s0, %s203
      %p205 = pneg %p50
      %p206 = pneg %p47
      %s207 = smul.u32 16, %s20
      %p208 = scmp.lt.s32.totalorder %s207, 15
      %s209 = scalar_select %p208, %s207, 15
      %s210 = smul.addr %s209, 4
      %s211 = scalar_lea.vmem %s1, %s210
      %p212 = pneg %p76
      %p213 = pneg %p73
      %p214 = pneg %p97
      %p215 = pneg %p94
      %p216 = pneg %p118
      %p217 = pneg %p115
      %p218 = pneg %p144
      %p219 = pneg %p141
      %s220 = smul.u32 32, %s19
      %p221 = scmp.lt.s32.totalorder %s220, 63
      %s222 = scalar_select %p221, %s220, 63
      %s223 = smul.addr %s222, 8
      %s224 = scalar_lea.vmem %s4, %s223
      %s225 = smul.u32 32, %s19
      %p226 = scmp.lt.s32.totalorder %s225, 63
      %s227 = scalar_select %p226, %s225, 63
      %p228 = scmp.lt.s32.totalorder %s20, 0
      %s229 = scalar_select %p228, %s20, 0
      %s230 = sadd.s32 %s229, %s227
      %s231 = smul.addr %s230, 4
      %s232 = scalar_lea.vmem %s0, %s231
      %s233 = smul.u32 32, %s19
      %s234 = smul.u32 16, %s20
      %p235 = scmp.lt.s32.totalorder %s234, 15
      %s236 = scalar_select %p235, %s234, 15
      %s237 = smul.addr %s236, 4
      %s238 = scalar_lea.vmem %s1, %s237
      %s239 = smul.u32 16, %s20
      %s240 = smul.u32 32, %s19
      %p241 = scmp.lt.s32.totalorder %s240, 63
      %s242 = scalar_select %p241, %s240, 63
      %s243 = smul.addr %s242, 8
      %s244 = scalar_lea.vmem %s4, %s243
      %s245 = smul.u32 32, %s19
      %p246 = scmp.eq.s32.totalorder %s20, 0
      // Predicated region
      $region37: #{base_conv_forward.3} parent=35 // pred_check
        %p247 = pneg %p246
      $region38: #{base_conv_forward.3} parent=35 // pred_check_branch
        %249 = sbr.rel (%p247) target = $region40
      $region39: #{base_conv_forward.3} parent=35 // pred_region
        %250 = vst [vmem:[#allocation2] sm:$0xff] 0.0
        %251 = vst [vmem:[#allocation2 + $0x8] sm:$0xff] 0.0
        %252 = vst [vmem:[#allocation2 + $0x10] sm:$0xff] 0.0
        %253 = vst [vmem:[#allocation2 + $0x18] sm:$0xff] 0.0
        %254 = vst [vmem:[#allocation2 + $0x20] sm:$0xff] 0.0
        %255 = vst [vmem:[#allocation2 + $0x28] sm:$0xff] 0.0
        %256 = vst [vmem:[#allocation2 + $0x30] sm:$0xff] 0.0
        %257 = vst [vmem:[#allocation2 + $0x38] sm:$0xff] 0.0
        %258 = vst [vmem:[#allocation2 + $0x40] sm:$0xff] 0.0
        %259 = vst [vmem:[#allocation2 + $0x48] sm:$0xff] 0.0
        %260 = vst [vmem:[#allocation2 + $0x50] sm:$0xff] 0.0
        %261 = vst [vmem:[#allocation2 + $0x58] sm:$0xff] 0.0
        %262 = vst [vmem:[#allocation2 + $0x60] sm:$0xff] 0.0
        %263 = vst [vmem:[#allocation2 + $0x68] sm:$0xff] 0.0
        %264 = vst [vmem:[#allocation2 + $0x70] sm:$0xff] 0.0
        %265 = vst [vmem:[#allocation2 + $0x78] sm:$0xff] 0.0
        %266 = vst [vmem:[#allocation2 + $0x80] sm:$0xff] 0.0
        %267 = vst [vmem:[#allocation2 + $0x88] sm:$0xff] 0.0
        %268 = vst [vmem:[#allocation2 + $0x90] sm:$0xff] 0.0
        %269 = vst [vmem:[#allocation2 + $0x98] sm:$0xff] 0.0
        %270 = vst [vmem:[#allocation2 + $0xa0] sm:$0xff] 0.0
        %271 = vst [vmem:[#allocation2 + $0xa8] sm:$0xff] 0.0
        %272 = vst [vmem:[#allocation2 + $0xb0] sm:$0xff] 0.0
        %273 = vst [vmem:[#allocation2 + $0xb8] sm:$0xff] 0.0
        %274 = vst [vmem:[#allocation2 + $0xc0] sm:$0xff] 0.0
        %275 = vst [vmem:[#allocation2 + $0xc8] sm:$0xff] 0.0
        %276 = vst [vmem:[#allocation2 + $0xd0] sm:$0xff] 0.0
        %277 = vst [vmem:[#allocation2 + $0xd8] sm:$0xff] 0.0
        %278 = vst [vmem:[#allocation2 + $0xe0] sm:$0xff] 0.0
        %279 = vst [vmem:[#allocation2 + $0xe8] sm:$0xff] 0.0
        %280 = vst [vmem:[#allocation2 + $0xf0] sm:$0xff] 0.0
        %281 = vst [vmem:[#allocation2 + $0xf8] sm:$0xff] 0.0
      $region40: #{base_conv_forward.3} parent=35 // pred_fallthru
        _
      %v282 = vld [vmem:[#allocation2] sm:$0xff]
      %v283 = vld [vmem:[#allocation2 + $0x8] sm:$0xff]
      %v284 = vld [vmem:[#allocation2 + $0x10] sm:$0xff]
      %v285 = vld [vmem:[#allocation2 + $0x18] sm:$0xff]
      %v286 = vld [vmem:[#allocation2 + $0x20] sm:$0xff]
      %v287 = vld [vmem:[#allocation2 + $0x28] sm:$0xff]
      %v288 = vld [vmem:[#allocation2 + $0x30] sm:$0xff]
      %v289 = vld [vmem:[#allocation2 + $0x38] sm:$0xff]
      %v290 = vld [vmem:[#allocation2 + $0x40] sm:$0xff]
      %v291 = vld [vmem:[#allocation2 + $0x48] sm:$0xff]
      %v292 = vld [vmem:[#allocation2 + $0x50] sm:$0xff]
      %v293 = vld [vmem:[#allocation2 + $0x58] sm:$0xff]
      %v294 = vld [vmem:[#allocation2 + $0x60] sm:$0xff]
      %v295 = vld [vmem:[#allocation2 + $0x68] sm:$0xff]
      %v296 = vld [vmem:[#allocation2 + $0x70] sm:$0xff]
      %v297 = vld [vmem:[#allocation2 + $0x78] sm:$0xff]
      %v298 = vld [vmem:[#allocation2 + $0x80] sm:$0xff]
      %v299 = vld [vmem:[#allocation2 + $0x88] sm:$0xff]
      %v300 = vld [vmem:[#allocation2 + $0x90] sm:$0xff]
      %v301 = vld [vmem:[#allocation2 + $0x98] sm:$0xff]
      %v302 = vld [vmem:[#allocation2 + $0xa0] sm:$0xff]
      %v303 = vld [vmem:[#allocation2 + $0xa8] sm:$0xff]
      %v304 = vld [vmem:[#allocation2 + $0xb0] sm:$0xff]
      %v305 = vld [vmem:[#allocation2 + $0xb8] sm:$0xff]
      %v306 = vld [vmem:[#allocation2 + $0xc0] sm:$0xff]
      %v307 = vld [vmem:[#allocation2 + $0xc8] sm:$0xff]
      %v308 = vld [vmem:[#allocation2 + $0xd0] sm:$0xff]
      %v309 = vld [vmem:[#allocation2 + $0xd8] sm:$0xff]
      %v310 = vld [vmem:[#allocation2 + $0xe0] sm:$0xff]
      %v311 = vld [vmem:[#allocation2 + $0xe8] sm:$0xff]
      %v312 = vld [vmem:[#allocation2 + $0xf0] sm:$0xff]
      %v313 = vld [vmem:[#allocation2 + $0xf8] sm:$0xff]
      %v314 = vld [vmem:[%s232] sm:$0xf]
      %v315 = vld [vmem:[%s232 + $0x4] sm:$0xf]
      %v316 = vld [vmem:[%s232 + $0x8] sm:$0xf]
      %v317 = vld [vmem:[%s232 + $0xc] sm:$0xf]
      %v318 = vld [vmem:[%s232 + $0x10] sm:$0xf]
      %v319 = vld [vmem:[%s232 + $0x14] sm:$0xf]
      %v320 = vld [vmem:[%s232 + $0x18] sm:$0xf]
      %v321 = vld [vmem:[%s232 + $0x1c] sm:$0xf]
      %v322 = vld [vmem:[%s232 + $0x20] sm:$0xf]
      %v323 = vld [vmem:[%s232 + $0x24] sm:$0xf]
      %v324 = vld [vmem:[%s232 + $0x28] sm:$0xf]
      %v325 = vld [vmem:[%s232 + $0x2c] sm:$0xf]
      %v326 = vld [vmem:[%s232 + $0x30] sm:$0xf]
      %v327 = vld [vmem:[%s232 + $0x34] sm:$0xf]
      %v328 = vld [vmem:[%s232 + $0x38] sm:$0xf]
      %v329 = vld [vmem:[%s232 + $0x3c] sm:$0xf]
      %v330 = vld [vmem:[%s232 + $0x40] sm:$0xf]
      %v331 = vld [vmem:[%s232 + $0x44] sm:$0xf]
      %v332 = vld [vmem:[%s232 + $0x48] sm:$0xf]
      %v333 = vld [vmem:[%s232 + $0x4c] sm:$0xf]
      %v334 = vld [vmem:[%s232 + $0x50] sm:$0xf]
      %v335 = vld [vmem:[%s232 + $0x54] sm:$0xf]
      %v336 = vld [vmem:[%s232 + $0x58] sm:$0xf]
      %v337 = vld [vmem:[%s232 + $0x5c] sm:$0xf]
      %v338 = vld [vmem:[%s232 + $0x60] sm:$0xf]
      %v339 = vld [vmem:[%s232 + $0x64] sm:$0xf]
      %v340 = vld [vmem:[%s232 + $0x68] sm:$0xf]
      %v341 = vld [vmem:[%s232 + $0x6c] sm:$0xf]
      %v342 = vld [vmem:[%s232 + $0x70] sm:$0xf]
      %v343 = vld [vmem:[%s232 + $0x74] sm:$0xf]
      %v344 = vld [vmem:[%s232 + $0x78] sm:$0xf]
      %v345 = vld [vmem:[%s232 + $0x7c] sm:$0xf]
      %v346 = vld [vmem:[%s238] sm:$0xf]
      %v347 = vld [vmem:[%s238 + $0x4] sm:$0xf]
      %v348 = vld [vmem:[%s238 + $0x8] sm:$0xf]
      %v349 = vld [vmem:[%s238 + $0xc] sm:$0xf]
      %v350 = vld [vmem:[%s238 + $0x10] sm:$0xf]
      %v351 = vld [vmem:[%s238 + $0x14] sm:$0xf]
      %v352 = vld [vmem:[%s238 + $0x18] sm:$0xf]
      %v353 = vld [vmem:[%s238 + $0x1c] sm:$0xf]
      %v354 = vld [vmem:[%s238 + $0x20] sm:$0xf]
      %v355 = vld [vmem:[%s238 + $0x24] sm:$0xf]
      %v356 = vld [vmem:[%s238 + $0x28] sm:$0xf]
      %v357 = vld [vmem:[%s238 + $0x2c] sm:$0xf]
      %v358 = vld [vmem:[%s238 + $0x30] sm:$0xf]
      %v359 = vld [vmem:[%s238 + $0x34] sm:$0xf]
      %v360 = vld [vmem:[%s238 + $0x38] sm:$0xf]
      %v361 = vld [vmem:[%s238 + $0x3c] sm:$0xf]
      %v394 = vunpack.c.l.b16 %v314
      %v395 = vunpack.c.l.b16 %v315
      %v396 = vunpack.c.l.b16 %v316
      %v397 = vunpack.c.l.b16 %v317
      %v398 = vunpack.c.l.b16 %v318
      %v399 = vunpack.c.l.b16 %v319
      %v400 = vunpack.c.l.b16 %v320
      %v401 = vunpack.c.l.b16 %v321
      %v402 = vunpack.c.l.b16 %v322
      %v403 = vunpack.c.l.b16 %v323
      %v404 = vunpack.c.l.b16 %v324
      %v405 = vunpack.c.l.b16 %v325
      %v406 = vunpack.c.l.b16 %v326
      %v407 = vunpack.c.l.b16 %v327
      %v408 = vunpack.c.l.b16 %v328
      %v409 = vunpack.c.l.b16 %v329
      %v410 = vunpack.c.l.b16 %v330
      %v411 = vunpack.c.l.b16 %v331
      %v412 = vunpack.c.l.b16 %v332
      %v413 = vunpack.c.l.b16 %v333
      %v414 = vunpack.c.l.b16 %v334
      %v415 = vunpack.c.l.b16 %v335
      %v416 = vunpack.c.l.b16 %v336
      %v417 = vunpack.c.l.b16 %v337
      %v418 = vunpack.c.l.b16 %v338
      %v419 = vunpack.c.l.b16 %v339
      %v420 = vunpack.c.l.b16 %v340
      %v421 = vunpack.c.l.b16 %v341
      %v422 = vunpack.c.l.b16 %v342
      %v423 = vunpack.c.l.b16 %v343
      %v424 = vunpack.c.l.b16 %v344
      %v425 = vunpack.c.l.b16 %v345
      %v426 = vpack.c.b16 %v395, %v394
      %v427 = vpack.c.b16 %v397, %v396
      %v428 = vpack.c.b16 %v399, %v398
      %v429 = vpack.c.b16 %v401, %v400
      %v430 = vpack.c.b16 %v403, %v402
      %v431 = vpack.c.b16 %v405, %v404
      %v432 = vpack.c.b16 %v407, %v406
      %v433 = vpack.c.b16 %v409, %v408
      %v434 = vpack.c.b16 %v411, %v410
      %v435 = vpack.c.b16 %v413, %v412
      %v436 = vpack.c.b16 %v415, %v414
      %v437 = vpack.c.b16 %v417, %v416
      %v438 = vpack.c.b16 %v419, %v418
      %v439 = vpack.c.b16 %v421, %v420
      %v440 = vpack.c.b16 %v423, %v422
      %v441 = vpack.c.b16 %v425, %v424
      %v474 = vunpack.c.l.b16 %v346
      %v475 = vunpack.c.l.b16 %v347
      %v476 = vunpack.c.l.b16 %v348
      %v477 = vunpack.c.l.b16 %v349
      %v478 = vunpack.c.l.b16 %v350
      %v479 = vunpack.c.l.b16 %v351
      %v480 = vunpack.c.l.b16 %v352
      %v481 = vunpack.c.l.b16 %v353
      %v482 = vunpack.c.l.b16 %v354
      %v483 = vunpack.c.l.b16 %v355
      %v484 = vunpack.c.l.b16 %v356
      %v485 = vunpack.c.l.b16 %v357
      %v486 = vunpack.c.l.b16 %v358
      %v487 = vunpack.c.l.b16 %v359
      %v488 = vunpack.c.l.b16 %v360
      %v489 = vunpack.c.l.b16 %v361
      %v490 = vpack.c.b16 %v475, %v474
      %v491 = vpack.c.b16 %v477, %v476
      %v492 = vpack.c.b16 %v479, %v478
      %v493 = vpack.c.b16 %v481, %v480
      %v494 = vpack.c.b16 %v483, %v482
      %v495 = vpack.c.b16 %v485, %v484
      %v496 = vpack.c.b16 %v487, %v486
      %v497 = vpack.c.b16 %v489, %v488
      %506 = vmatpush.bf16.msra.mxu0 %v497
      %507 = vmatpush.bf16.msra.mxu0 %v496
      %508 = vmatpush.bf16.msra.mxu0 %v495
      %509 = vmatpush.bf16.msra.mxu0 %v494
      %510 = vmatpush.bf16.msra.mxu0 %v493
      %511 = vmatpush.bf16.msra.mxu0 %v492
      %512 = vmatpush.bf16.msra.mxu0 %v491
      %513 = vmatpush.bf16.msra.mxu0 %v490
      %514 = vmatmul.bf16.gmra.mxu0 %v426
      %v515 = vpop.f32.mrf.mxu0
      %v516 = vadd.f32 0.0, %v515
      %v517 = vpop.f32.mrf.mxu0
      %v518 = vadd.f32 0.0, %v517
      %519 = vmatmul.bf16.gmra.mxu0 %v427
      %v520 = vpop.f32.mrf.mxu0
      %v521 = vadd.f32 0.0, %v520
      %v522 = vpop.f32.mrf.mxu0
      %v523 = vadd.f32 0.0, %v522
      %524 = vmatmul.bf16.gmra.mxu0 %v428
      %v525 = vpop.f32.mrf.mxu0
      %v526 = vadd.f32 0.0, %v525
      %v527 = vpop.f32.mrf.mxu0
      %v528 = vadd.f32 0.0, %v527
      %529 = vmatmul.bf16.gmra.mxu0 %v429
      %v530 = vpop.f32.mrf.mxu0
      %v531 = vadd.f32 0.0, %v530
      %v532 = vpop.f32.mrf.mxu0
      %v533 = vadd.f32 0.0, %v532
      %534 = vmatmul.bf16.gmra.mxu0 %v430
      %v535 = vpop.f32.mrf.mxu0
      %v536 = vadd.f32 0.0, %v535
      %v537 = vpop.f32.mrf.mxu0
      %v538 = vadd.f32 0.0, %v537
      %539 = vmatmul.bf16.gmra.mxu0 %v431
      %v540 = vpop.f32.mrf.mxu0
      %v541 = vadd.f32 0.0, %v540
      %v542 = vpop.f32.mrf.mxu0
      %v543 = vadd.f32 0.0, %v542
      %544 = vmatmul.bf16.gmra.mxu0 %v432
      %v545 = vpop.f32.mrf.mxu0
      %v546 = vadd.f32 0.0, %v545
      %v547 = vpop.f32.mrf.mxu0
      %v548 = vadd.f32 0.0, %v547
      %549 = vmatmul.bf16.gmra.mxu0 %v433
      %v550 = vpop.f32.mrf.mxu0
      %v551 = vadd.f32 0.0, %v550
      %v552 = vpop.f32.mrf.mxu0
      %v553 = vadd.f32 0.0, %v552
      %554 = vmatmul.bf16.gmra.mxu0 %v434
      %v555 = vpop.f32.mrf.mxu0
      %v556 = vadd.f32 0.0, %v555
      %v557 = vpop.f32.mrf.mxu0
      %v558 = vadd.f32 0.0, %v557
      %559 = vmatmul.bf16.gmra.mxu0 %v435
      %v560 = vpop.f32.mrf.mxu0
      %v561 = vadd.f32 0.0, %v560
      %v562 = vpop.f32.mrf.mxu0
      %v563 = vadd.f32 0.0, %v562
      %564 = vmatmul.bf16.gmra.mxu0 %v436
      %v565 = vpop.f32.mrf.mxu0
      %v566 = vadd.f32 0.0, %v565
      %v567 = vpop.f32.mrf.mxu0
      %v568 = vadd.f32 0.0, %v567
      %569 = vmatmul.bf16.gmra.mxu0 %v437
      %v570 = vpop.f32.mrf.mxu0
      %v571 = vadd.f32 0.0, %v570
      %v572 = vpop.f32.mrf.mxu0
      %v573 = vadd.f32 0.0, %v572
      %574 = vmatmul.bf16.gmra.mxu0 %v438
      %v575 = vpop.f32.mrf.mxu0
      %v576 = vadd.f32 0.0, %v575
      %v577 = vpop.f32.mrf.mxu0
      %v578 = vadd.f32 0.0, %v577
      %579 = vmatmul.bf16.gmra.mxu0 %v439
      %v580 = vpop.f32.mrf.mxu0
      %v581 = vadd.f32 0.0, %v580
      %v582 = vpop.f32.mrf.mxu0
      %v583 = vadd.f32 0.0, %v582
      %584 = vmatmul.bf16.gmra.mxu0 %v440
      %v585 = vpop.f32.mrf.mxu0
      %v586 = vadd.f32 0.0, %v585
      %v587 = vpop.f32.mrf.mxu0
      %v588 = vadd.f32 0.0, %v587
      %589 = vmatmul.bf16.gmra.mxu0 %v441
      %v590 = vpop.f32.mrf.mxu0
      %v591 = vadd.f32 0.0, %v590
      %v592 = vpop.f32.mrf.mxu0
      %v593 = vadd.f32 0.0, %v592
      %594 = vdwg.mxu0
      %v595 = vadd.f32 %v282, %v516
      %v596 = vadd.f32 %v283, %v518
      %v597 = vadd.f32 %v284, %v521
      %v598 = vadd.f32 %v285, %v523
      %v599 = vadd.f32 %v286, %v526
      %v600 = vadd.f32 %v287, %v528
      %v601 = vadd.f32 %v288, %v531
      %v602 = vadd.f32 %v289, %v533
      %v603 = vadd.f32 %v290, %v536
      %v604 = vadd.f32 %v291, %v538
      %v605 = vadd.f32 %v292, %v541
      %v606 = vadd.f32 %v293, %v543
      %v607 = vadd.f32 %v294, %v546
      %v608 = vadd.f32 %v295, %v548
      %v609 = vadd.f32 %v296, %v551
      %v610 = vadd.f32 %v297, %v553
      %v611 = vadd.f32 %v298, %v556
      %v612 = vadd.f32 %v299, %v558
      %v613 = vadd.f32 %v300, %v561
      %v614 = vadd.f32 %v301, %v563
      %v615 = vadd.f32 %v302, %v566
      %v616 = vadd.f32 %v303, %v568
      %v617 = vadd.f32 %v304, %v571
      %v618 = vadd.f32 %v305, %v573
      %v619 = vadd.f32 %v306, %v576
      %v620 = vadd.f32 %v307, %v578
      %v621 = vadd.f32 %v308, %v581
      %v622 = vadd.f32 %v309, %v583
      %v623 = vadd.f32 %v310, %v586
      %v624 = vadd.f32 %v311, %v588
      %v625 = vadd.f32 %v312, %v591
      %v626 = vadd.f32 %v313, %v593
      %627 = vst [vmem:[#allocation2] sm:$0xff] %v595
      %628 = vst [vmem:[#allocation2 + $0x8] sm:$0xff] %v596
      %629 = vst [vmem:[#allocation2 + $0x10] sm:$0xff] %v597
      %630 = vst [vmem:[#allocation2 + $0x18] sm:$0xff] %v598
      %631 = vst [vmem:[#allocation2 + $0x20] sm:$0xff] %v599
      %632 = vst [vmem:[#allocation2 + $0x28] sm:$0xff] %v600
      %633 = vst [vmem:[#allocation2 + $0x30] sm:$0xff] %v601
      %634 = vst [vmem:[#allocation2 + $0x38] sm:$0xff] %v602
      %635 = vst [vmem:[#allocation2 + $0x40] sm:$0xff] %v603
      %636 = vst [vmem:[#allocation2 + $0x48] sm:$0xff] %v604
      %637 = vst [vmem:[#allocation2 + $0x50] sm:$0xff] %v605
      %638 = vst [vmem:[#allocation2 + $0x58] sm:$0xff] %v606
      %639 = vst [vmem:[#allocation2 + $0x60] sm:$0xff] %v607
      %640 = vst [vmem:[#allocation2 + $0x68] sm:$0xff] %v608
      %641 = vst [vmem:[#allocation2 + $0x70] sm:$0xff] %v609
      %642 = vst [vmem:[#allocation2 + $0x78] sm:$0xff] %v610
      %643 = vst [vmem:[#allocation2 + $0x80] sm:$0xff] %v611
      %644 = vst [vmem:[#allocation2 + $0x88] sm:$0xff] %v612
      %645 = vst [vmem:[#allocation2 + $0x90] sm:$0xff] %v613
      %646 = vst [vmem:[#allocation2 + $0x98] sm:$0xff] %v614
      %647 = vst [vmem:[#allocation2 + $0xa0] sm:$0xff] %v615
      %648 = vst [vmem:[#allocation2 + $0xa8] sm:$0xff] %v616
      %649 = vst [vmem:[#allocation2 + $0xb0] sm:$0xff] %v617
      %650 = vst [vmem:[#allocation2 + $0xb8] sm:$0xff] %v618
      %651 = vst [vmem:[#allocation2 + $0xc0] sm:$0xff] %v619
      %652 = vst [vmem:[#allocation2 + $0xc8] sm:$0xff] %v620
      %653 = vst [vmem:[#allocation2 + $0xd0] sm:$0xff] %v621
      %654 = vst [vmem:[#allocation2 + $0xd8] sm:$0xff] %v622
      %655 = vst [vmem:[#allocation2 + $0xe0] sm:$0xff] %v623
      %656 = vst [vmem:[#allocation2 + $0xe8] sm:$0xff] %v624
      %657 = vst [vmem:[#allocation2 + $0xf0] sm:$0xff] %v625
      %658 = vst [vmem:[#allocation2 + $0xf8] sm:$0xff] %v626
      // Predicated region
      $region41: #{base_conv_forward.3} parent=35 // pred_check
        %p659 = pneg %p246
      $region42: #{base_conv_forward.3} parent=35 // pred_check_branch
        %661 = sbr.rel (%p659) target = $region44
      $region43: #{base_conv_forward.3} parent=35 // pred_region
        %v662 = vld [vmem:[#allocation2] sm:$0xff]
        %v663 = vld [vmem:[#allocation2 + $0x8] sm:$0xff]
        %v664 = vld [vmem:[#allocation2 + $0x10] sm:$0xff]
        %v665 = vld [vmem:[#allocation2 + $0x18] sm:$0xff]
        %v666 = vld [vmem:[#allocation2 + $0x20] sm:$0xff]
        %v667 = vld [vmem:[#allocation2 + $0x28] sm:$0xff]
        %v668 = vld [vmem:[#allocation2 + $0x30] sm:$0xff]
        %v669 = vld [vmem:[#allocation2 + $0x38] sm:$0xff]
        %v670 = vld [vmem:[#allocation2 + $0x40] sm:$0xff]
        %v671 = vld [vmem:[#allocation2 + $0x48] sm:$0xff]
        %v672 = vld [vmem:[#allocation2 + $0x50] sm:$0xff]
        %v673 = vld [vmem:[#allocation2 + $0x58] sm:$0xff]
        %v674 = vld [vmem:[#allocation2 + $0x60] sm:$0xff]
        %v675 = vld [vmem:[#allocation2 + $0x68] sm:$0xff]
        %v676 = vld [vmem:[#allocation2 + $0x70] sm:$0xff]
        %v677 = vld [vmem:[#allocation2 + $0x78] sm:$0xff]
        %v678 = vld [vmem:[#allocation2 + $0x80] sm:$0xff]
        %v679 = vld [vmem:[#allocation2 + $0x88] sm:$0xff]
        %v680 = vld [vmem:[#allocation2 + $0x90] sm:$0xff]
        %v681 = vld [vmem:[#allocation2 + $0x98] sm:$0xff]
        %v682 = vld [vmem:[#allocation2 + $0xa0] sm:$0xff]
        %v683 = vld [vmem:[#allocation2 + $0xa8] sm:$0xff]
        %v684 = vld [vmem:[#allocation2 + $0xb0] sm:$0xff]
        %v685 = vld [vmem:[#allocation2 + $0xb8] sm:$0xff]
        %v686 = vld [vmem:[#allocation2 + $0xc0] sm:$0xff]
        %v687 = vld [vmem:[#allocation2 + $0xc8] sm:$0xff]
        %v688 = vld [vmem:[#allocation2 + $0xd0] sm:$0xff]
        %v689 = vld [vmem:[#allocation2 + $0xd8] sm:$0xff]
        %v690 = vld [vmem:[#allocation2 + $0xe0] sm:$0xff]
        %v691 = vld [vmem:[#allocation2 + $0xe8] sm:$0xff]
        %v692 = vld [vmem:[#allocation2 + $0xf0] sm:$0xff]
        %v693 = vld [vmem:[#allocation2 + $0xf8] sm:$0xff]
        %v694 = vld [vmem:[%s2] sm:$0x1]
        %v696 = vperm.slane %v694, 0
        %v698 = vmul.f32 %v662, %v696
        %v699 = vmul.f32 %v663, %v696
        %v700 = vmul.f32 %v664, %v696
        %v701 = vmul.f32 %v665, %v696
        %v702 = vmul.f32 %v666, %v696
        %v703 = vmul.f32 %v667, %v696
        %v704 = vmul.f32 %v668, %v696
        %v705 = vmul.f32 %v669, %v696
        %v706 = vmul.f32 %v670, %v696
        %v707 = vmul.f32 %v671, %v696
        %v708 = vmul.f32 %v672, %v696
        %v709 = vmul.f32 %v673, %v696
        %v710 = vmul.f32 %v674, %v696
        %v711 = vmul.f32 %v675, %v696
        %v712 = vmul.f32 %v676, %v696
        %v713 = vmul.f32 %v677, %v696
        %v714 = vmul.f32 %v678, %v696
        %v715 = vmul.f32 %v679, %v696
        %v716 = vmul.f32 %v680, %v696
        %v717 = vmul.f32 %v681, %v696
        %v718 = vmul.f32 %v682, %v696
        %v719 = vmul.f32 %v683, %v696
        %v720 = vmul.f32 %v684, %v696
        %v721 = vmul.f32 %v685, %v696
        %v722 = vmul.f32 %v686, %v696
        %v723 = vmul.f32 %v687, %v696
        %v724 = vmul.f32 %v688, %v696
        %v725 = vmul.f32 %v689, %v696
        %v726 = vmul.f32 %v690, %v696
        %v727 = vmul.f32 %v691, %v696
        %v728 = vmul.f32 %v692, %v696
        %v729 = vmul.f32 %v693, %v696
        %v730 = vld [vmem:[%s3] sm:$0x1]
        %v732 = vperm.slane %v730, 0
        %v734 = vadd.f32 %v698, %v732
        %v735 = vadd.f32 %v699, %v732
        %v736 = vadd.f32 %v700, %v732
        %v737 = vadd.f32 %v701, %v732
        %v738 = vadd.f32 %v702, %v732
        %v739 = vadd.f32 %v703, %v732
        %v740 = vadd.f32 %v704, %v732
        %v741 = vadd.f32 %v705, %v732
        %v742 = vadd.f32 %v706, %v732
        %v743 = vadd.f32 %v707, %v732
        %v744 = vadd.f32 %v708, %v732
        %v745 = vadd.f32 %v709, %v732
        %v746 = vadd.f32 %v710, %v732
        %v747 = vadd.f32 %v711, %v732
        %v748 = vadd.f32 %v712, %v732
        %v749 = vadd.f32 %v713, %v732
        %v750 = vadd.f32 %v714, %v732
        %v751 = vadd.f32 %v715, %v732
        %v752 = vadd.f32 %v716, %v732
        %v753 = vadd.f32 %v717, %v732
        %v754 = vadd.f32 %v718, %v732
        %v755 = vadd.f32 %v719, %v732
        %v756 = vadd.f32 %v720, %v732
        %v757 = vadd.f32 %v721, %v732
        %v758 = vadd.f32 %v722, %v732
        %v759 = vadd.f32 %v723, %v732
        %v760 = vadd.f32 %v724, %v732
        %v761 = vadd.f32 %v725, %v732
        %v762 = vadd.f32 %v726, %v732
        %v763 = vadd.f32 %v727, %v732
        %v764 = vadd.f32 %v728, %v732
        %v765 = vadd.f32 %v729, %v732
        %v766 = vmax.f32 %v734, 0.0
        %v767 = vmax.f32 %v735, 0.0
        %v768 = vmax.f32 %v736, 0.0
        %v769 = vmax.f32 %v737, 0.0
        %v770 = vmax.f32 %v738, 0.0
        %v771 = vmax.f32 %v739, 0.0
        %v772 = vmax.f32 %v740, 0.0
        %v773 = vmax.f32 %v741, 0.0
        %v774 = vmax.f32 %v742, 0.0
        %v775 = vmax.f32 %v743, 0.0
        %v776 = vmax.f32 %v744, 0.0
        %v777 = vmax.f32 %v745, 0.0
        %v778 = vmax.f32 %v746, 0.0
        %v779 = vmax.f32 %v747, 0.0
        %v780 = vmax.f32 %v748, 0.0
        %v781 = vmax.f32 %v749, 0.0
        %v782 = vmax.f32 %v750, 0.0
        %v783 = vmax.f32 %v751, 0.0
        %v784 = vmax.f32 %v752, 0.0
        %v785 = vmax.f32 %v753, 0.0
        %v786 = vmax.f32 %v754, 0.0
        %v787 = vmax.f32 %v755, 0.0
        %v788 = vmax.f32 %v756, 0.0
        %v789 = vmax.f32 %v757, 0.0
        %v790 = vmax.f32 %v758, 0.0
        %v791 = vmax.f32 %v759, 0.0
        %v792 = vmax.f32 %v760, 0.0
        %v793 = vmax.f32 %v761, 0.0
        %v794 = vmax.f32 %v762, 0.0
        %v795 = vmax.f32 %v763, 0.0
        %v796 = vmax.f32 %v764, 0.0
        %v797 = vmax.f32 %v765, 0.0
        %798 = vst [vmem:[%s244] sm:$0xff] %v766
        %799 = vst [vmem:[%s244 + $0x8] sm:$0xff] %v767
        %800 = vst [vmem:[%s244 + $0x10] sm:$0xff] %v768
        %801 = vst [vmem:[%s244 + $0x18] sm:$0xff] %v769
        %802 = vst [vmem:[%s244 + $0x20] sm:$0xff] %v770
        %803 = vst [vmem:[%s244 + $0x28] sm:$0xff] %v771
        %804 = vst [vmem:[%s244 + $0x30] sm:$0xff] %v772
        %805 = vst [vmem:[%s244 + $0x38] sm:$0xff] %v773
        %806 = vst [vmem:[%s244 + $0x40] sm:$0xff] %v774
        %807 = vst [vmem:[%s244 + $0x48] sm:$0xff] %v775
        %808 = vst [vmem:[%s244 + $0x50] sm:$0xff] %v776
        %809 = vst [vmem:[%s244 + $0x58] sm:$0xff] %v777
        %810 = vst [vmem:[%s244 + $0x60] sm:$0xff] %v778
        %811 = vst [vmem:[%s244 + $0x68] sm:$0xff] %v779
        %812 = vst [vmem:[%s244 + $0x70] sm:$0xff] %v780
        %813 = vst [vmem:[%s244 + $0x78] sm:$0xff] %v781
        %814 = vst [vmem:[%s244 + $0x80] sm:$0xff] %v782
        %815 = vst [vmem:[%s244 + $0x88] sm:$0xff] %v783
        %816 = vst [vmem:[%s244 + $0x90] sm:$0xff] %v784
        %817 = vst [vmem:[%s244 + $0x98] sm:$0xff] %v785
        %818 = vst [vmem:[%s244 + $0xa0] sm:$0xff] %v786
        %819 = vst [vmem:[%s244 + $0xa8] sm:$0xff] %v787
        %820 = vst [vmem:[%s244 + $0xb0] sm:$0xff] %v788
        %821 = vst [vmem:[%s244 + $0xb8] sm:$0xff] %v789
        %822 = vst [vmem:[%s244 + $0xc0] sm:$0xff] %v790
        %823 = vst [vmem:[%s244 + $0xc8] sm:$0xff] %v791
        %824 = vst [vmem:[%s244 + $0xd0] sm:$0xff] %v792
        %825 = vst [vmem:[%s244 + $0xd8] sm:$0xff] %v793
        %826 = vst [vmem:[%s244 + $0xe0] sm:$0xff] %v794
        %827 = vst [vmem:[%s244 + $0xe8] sm:$0xff] %v795
        %828 = vst [vmem:[%s244 + $0xf0] sm:$0xff] %v796
        %829 = vst [vmem:[%s244 + $0xf8] sm:$0xff] %v797
      $region44: #{base_conv_forward.3} parent=35 // pred_fallthru
        _
      %s830 = smul.u32 32, %s19
      %p831 = scmp.lt.s32.totalorder %s830, 63
      %s832 = scalar_select %p831, %s830, 63
      %s833 = smul.addr %s832, 8
      %s834 = scalar_lea.vmem %s4, %s833
      // Predicated region
      $region45: #{base_conv_forward.3} parent=35 // pred_check
        %p835 = pneg %p141
      $region46: #{base_conv_forward.3} parent=35 // pred_check_branch
        %837 = sbr.rel (%p835) target = $region48
      $region47: #{base_conv_forward.3} parent=35 // pred_region
        %s838 = smul.u32 32, %s19
      $region48: #{base_conv_forward.3} parent=35 // pred_fallthru
        _
    $region36: #{base_conv_forward.3} parent=5 // pred_fallthru
      _
    %p839 = scmp.le.s32.totalorder 2, %s10
    // Predicated region
    $region49: #{base_conv_forward.3} parent=5 // pred_check
      %p840 = pneg %p839
    $region50: #{base_conv_forward.3} parent=5 // pred_check_branch
      %842 = sbr.rel (%p840) target = $region52
    $region51: #{base_conv_forward.3} parent=5 // pred_region
      %s843 = ssub.s32 %s10, 2
      // Predicated region
      $region53: #{base_conv_forward.3} parent=51 // pred_check
        %p844 = pneg %p147
      $region54: #{base_conv_forward.3} parent=51 // pred_check_branch
        %846 = sbr.rel (%p844) target = $region56
      $region55: #{base_conv_forward.3} parent=51 // pred_region
        %s847 = smul.u32 32, %s21
        %p848 = scmp.lt.s32.totalorder %s847, 63
        %s849 = scalar_select %p848, %s847, 63
        %s850 = smul.addr %s849, 8
        %s851 = scalar_lea.vmem %s4, %s850
      $region56: #{base_conv_forward.3} parent=51 // pred_fallthru
        _
    $region52: #{base_conv_forward.3} parent=5 // pred_fallthru
      _
  $region6: #{base_conv_forward.3} parent=0 // loop_footer
    %s14 = sadd.s32 1, %s10
  $region7: #{base_conv_forward.3} parent=0 // loop_footer_branch
    %9 = sbr.rel target = $region3
  $region8: #{base_conv_forward.3} parent=0 // loop_exit
    _

</llo_original>
